<compile_context>
chip_gen: v5e
topology: v5e:2x2
jax: 0.10.0
libtpu: 0.0.40
codegen_flags: <defaults>
</compile_context>

<pallas_src>
import functools

import jax
import jax.numpy as jnp
import numpy as np
from jax.experimental import pallas as pl
from jax.experimental.pallas import tpu as pltpu  # noqa: F401  (TPU backend)

# ----------------------------- configuration --------------------------------
HIDDEN = 32        # args.hidden_units
MAXLEN = 8         # args.maxlen (sequence length T)
CTX_DIM = 8        # args.context_emb_dim
NUM_BLOCKS = 2     # args.num_blocks
NUM_HEADS = 2      # args.num_heads
NUM_EXPERTS = 2    # args.num_experts (only expert 0 runs: current_expert_idx=0)
ALPHA = 0.5        # args.alpha (does not affect the single-expert output)
USER_NUM = 10
ITEM_NUM = 20
PID_SIZE = 5
BATCH = 2

EPS_SAS = 1e-8     # SASRec layernorms (attention / forward / last)
EPS_MOE = 1e-5     # BoostingMoE.layer_norm (PyTorch default eps)

# ---- static layout of the fused "gather table" (rows of width HIDDEN) ------
CTX_SIZES = (USER_NUM + 1, PID_SIZE + 1, 24, 7, 4, 2)  # user,pid,hour,dow,hb,iw
OFF_ITEM = 0                                  # raw item_emb rows
OFF_POS = 24                                  # pos_emb rows
OFF_CTX = 40                                  # ctx tables pre-folded w/ fuse_w_ctx
CTX_OFFSETS = tuple(OFF_CTX + int(np.sum(CTX_SIZES[:f])) for f in range(6))
ROW_BIAS = OFF_CTX + int(np.sum(CTX_SIZES))   # fusion bias (+ folded last-LN bias)
OFF_WFF = 96                                  # fusion feature weights (LN folded)
GT_ROWS = OFF_WFF + HIDDEN                    # 128 rows total

assert OFF_POS >= ITEM_NUM + 1 and OFF_POS % 8 == 0
assert OFF_CTX >= OFF_POS + MAXLEN + 1 and OFF_CTX % 8 == 0
assert OFF_WFF > ROW_BIAS and OFF_WFF % 8 == 0 and GT_ROWS <= 128

# TODO(synk): all Dropout layers (incl. the inline nn.Dropout(0.2) in the
#   PyTorch forward) are identity (inference behaviour).
# TODO(synk): only the current_expert_idx == 0 path of BoostingMoE is
#   implemented; the multi-expert boosting loop and its detach() bookkeeping
#   are training-time behaviour.
# TODO(synk): at this spec size (B*T = 16 rows) a grid is pure overhead; for
#   large batches add a ("parallel",) row-tile grid (to engage both v7x
#   TensorCores) with per-sequence T x T attention scoring so score storage
#   does not grow O((B*T)^2), and optionally store weights in bf16 for MXU.


def _layer_norm(z, w, b, eps):
    mu = jnp.mean(z, axis=-1, keepdims=True)
    var = jnp.mean((z - mu) ** 2, axis=-1, keepdims=True)
    return (z - mu) * jax.lax.rsqrt(var + eps) * w + b


# --------------------------- fused full-model kernel -------------------------
def sasrec_fused_kernel(seq_idx_ref, ctx_idx_ref, item_idx_ref,
                        gtab_ref, blkw_ref, blkv_ref, o_ref,
                        *, num_blocks, num_heads, batch, seqlen):
    f32 = jnp.float32
    H = HIDDEN
    B, T = batch, seqlen
    BT = B * T
    hd = H // num_heads

    gtab = gtab_ref[...]                                    # (GT_ROWS, H)

    # ---- fused gather: sequence (item + position) embeddings ----------------
    seq_idx = seq_idx_ref[...]                              # (BT, 1) int32
    col_bt = jax.lax.broadcasted_iota(jnp.int32, (BT, GT_ROWS), 1)
    r1 = jax.lax.broadcasted_iota(jnp.int32, (BT, 1), 0)
    bid1 = jnp.zeros((BT, 1), jnp.int32)                    # batch id per row
    for b in range(1, B):
        bid1 = bid1 + jnp.where(r1 >= b * T, 1, 0)
    t_in = r1 - bid1 * T                                    # time within sequence
    pos_col = jnp.where(seq_idx != 0, t_in + (OFF_POS + 1), OFF_POS)
    oh_seq = (jnp.where(col_bt == seq_idx + OFF_ITEM, float(np.sqrt(H)), 0.0)
              + jnp.where(col_bt == pos_col, 1.0, 0.0))
    x = jnp.dot(oh_seq, gtab, preferred_element_type=f32)   # (BT, H) = seqs

    # ---- hoisted head-path work (independent of the transformer blocks) -----
    col_b = jax.lax.broadcasted_iota(jnp.int32, (B, GT_ROWS), 1)
    ctx_idx = ctx_idx_ref[...]                              # (B, 6) int32
    oh_ctx = jnp.where(col_b == ROW_BIAS, 1.0, 0.0)         # fusion-bias row
    for f in range(6):
        oh_ctx = oh_ctx + jnp.where(
            col_b == ctx_idx[:, f:f + 1] + CTX_OFFSETS[f], 1.0, 0.0)
    # (B, H): ctx_embs @ fuse_w_ctx + fuse_b + last_ln_b @ fuse_w_feat
    head_ctx = jnp.dot(oh_ctx, gtab, preferred_element_type=f32)

    item_idx = item_idx_ref[...]                            # (B, 1) int32
    oh_item = jnp.where(col_b == item_idx + OFF_ITEM, 1.0, 0.0)
    item_vec = jnp.dot(oh_item, gtab, preferred_element_type=f32)  # (B, H)

    # additive block-diagonal causal mask, hoisted and reused by every block
    row = jax.lax.broadcasted_iota(jnp.int32, (BT, BT), 0)
    col = jax.lax.broadcasted_iota(jnp.int32, (BT, BT), 1)
    same = None
    for b in range(B):
        rb = (row >= b * T) & (row < (b + 1) * T)
        cb = (col >= b * T) & (col < (b + 1) * T)
        m = rb & cb
        same = m if same is None else (same | m)
    attn_bias = jnp.where(same & (col <= row), 0.0, -1e30)  # (BT, BT) f32

    # ---- transformer blocks (static unroll) ----------------------------------
    for blk in range(num_blocks):
        w = blkw_ref[blk]                                   # (6H, H)
        vec = blkv_ref[blk]                                 # (16, H)
        wq, wk, wv = w[0:H], w[H:2 * H], w[2 * H:3 * H]     # Q pre-scaled
        wo, we1, wmoe = w[3 * H:4 * H], w[4 * H:5 * H], w[5 * H:6 * H]
        ln1w, ln1b = vec[0:1], vec[1:2]
        bq, bk, bv, bo = vec[2:3], vec[3:4], vec[4:5], vec[5:6]
        ln2w, ln2b = vec[6:7], vec[7:8]
        eb1, bmoe = vec[8:9], vec[9:10]
        mlnw, mlnb = vec[10:11], vec[11:12]

        # attention layernorm: query is normed, key/value use the raw input
        q_in = _layer_norm(x, ln1w, ln1b, EPS_SAS)
        q = jnp.dot(q_in, wq, preferred_element_type=f32) + bq
        k = jnp.dot(x, wk, preferred_element_type=f32) + bk
        v = jnp.dot(x, wv, preferred_element_type=f32) + bv

        # per-head attention; W_o projection folded into the head loop
        mha = None
        for h in range(num_heads):
            lo, hi = h * hd, (h + 1) * hd
            s = jax.lax.dot_general(q[:, lo:hi], k[:, lo:hi],
                                    (((1,), (1,)), ((), ())),
                                    preferred_element_type=f32)
            s = s + attn_bias
            s = s - jnp.max(s, axis=-1, keepdims=True)
            p = jnp.exp(s)
            p = p / jnp.sum(p, axis=-1, keepdims=True)      # exact softmax
            head = jnp.dot(p, v[:, lo:hi], preferred_element_type=f32)
            proj = jnp.dot(head, wo[lo:hi, :], preferred_element_type=f32)
            mha = proj if mha is None else mha + proj
        x = q_in + mha + bo                                 # residual on LN'd Q

        # forward layernorm + BoostingMoE (expert0, attn_proj_v folded)
        x2 = _layer_norm(x, ln2w, ln2b, EPS_SAS)
        h1 = jnp.maximum(
            jnp.dot(x2, we1, preferred_element_type=f32) + eb1, 0.0)
        fused = jnp.dot(h1, wmoe, preferred_element_type=f32) + bmoe
        x = _layer_norm(x2 + fused, mlnw, mlnb, EPS_MOE)

    # ---- head: last timestep per sequence via static sublane slices ---------
    last = jnp.concatenate(
        [x[b * T + T - 1:b * T + T, :] for b in range(B)], axis=0)   # (B, H)
    mu = jnp.mean(last, axis=-1, keepdims=True)
    var = jnp.mean((last - mu) ** 2, axis=-1, keepdims=True)
    norml = (last - mu) * jax.lax.rsqrt(var + EPS_SAS)      # LN affine folded
    wff = gtab[OFF_WFF:OFF_WFF + H, :]                      # fusion feat weights
    fused_feat = jnp.dot(norml, wff, preferred_element_type=f32) + head_ctx
    o_ref[...] = jnp.sum(fused_feat * item_vec, axis=-1, keepdims=True)


def run_fused(seq_idx, ctx_idx, item_idx, kp, *, batch, seqlen):
    out = pl.pallas_call(
        functools.partial(sasrec_fused_kernel, num_blocks=NUM_BLOCKS,
                          num_heads=NUM_HEADS, batch=batch, seqlen=seqlen),
        out_shape=jax.ShapeDtypeStruct((batch, 1), jnp.float32),
    )(seq_idx, ctx_idx, item_idx, kp["gtab"], kp["blk_w"], kp["blk_v"])
    return out[:, 0]


# ------------------------------ parameters -----------------------------------
def init_params(key):
    ks = iter(jax.random.split(key, 64))

    def nrm(shape, scale=0.02):
        return jax.random.normal(next(ks), shape, jnp.float32) * scale

    p = {}
    # embeddings (padding_idx=0 rows zeroed where applicable)
    p["item_emb"] = nrm((ITEM_NUM + 1, HIDDEN)).at[0].set(0.0)
    p["pos_emb"] = nrm((MAXLEN + 1, HIDDEN)).at[0].set(0.0)
    p["user_emb"] = nrm((USER_NUM + 1, CTX_DIM)).at[0].set(0.0)
    p["pid_emb"] = nrm((PID_SIZE + 1, CTX_DIM)).at[0].set(0.0)
    p["hour_emb"] = nrm((24, CTX_DIM))
    p["dow_emb"] = nrm((7, CTX_DIM))
    p["hour_block_emb"] = nrm((4, CTX_DIM))
    p["is_weekend_emb"] = nrm((2, CTX_DIM))

    blocks = []
    for _ in range(NUM_BLOCKS):
        blk = dict(
            ln1_w=1.0 + nrm((1, HIDDEN)), ln1_b=nrm((1, HIDDEN)),
            # weights stored as (in, out); PyTorch Linear stores (out, in)
            w_qkv=nrm((HIDDEN, 3 * HIDDEN), 0.05), b_qkv=nrm((1, 3 * HIDDEN)),
            w_o=nrm((HIDDEN, HIDDEN), 0.05), b_o=nrm((1, HIDDEN)),
            ln2_w=1.0 + nrm((1, HIDDEN)), ln2_b=nrm((1, HIDDEN)),
            e_w1=nrm((HIDDEN, HIDDEN), 0.05), e_b1=nrm((1, HIDDEN)),
            e_w2=nrm((HIDDEN, HIDDEN), 0.05), e_b2=nrm((1, HIDDEN)),
            av_w=nrm((HIDDEN, HIDDEN), 0.05), av_b=nrm((1, HIDDEN)),
            mln_w=1.0 + nrm((1, HIDDEN)), mln_b=nrm((1, HIDDEN)),
        )
        blocks.append(blk)
    p["blocks"] = blocks
    p["last_ln_w"] = 1.0 + nrm((1, HIDDEN))
    p["last_ln_b"] = nrm((1, HIDDEN))
    p["fuse_w"] = nrm((HIDDEN + 6 * CTX_DIM, HIDDEN), 0.05)
    p["fuse_b"] = nrm((1, HIDDEN))
    return p


def prepare_params(p):
    """One-time packing & algebraic folding (no per-call work).

    gtab  (GT_ROWS, H): item_emb | pos_emb | per-field (ctx_emb @ fuse_w_ctx)
          | fusion-bias row (fuse_b + last_ln_b @ fuse_w_feat) | last-LN-folded
          fusion feature weights.
    blk_w (NUM_BLOCKS, 6H, H): Wq/sqrt(hd) | Wk | Wv | Wo | expert_W1 |
          expert_W2 @ attn_proj_v_W   (MoE output projection folded).
    blk_v (NUM_BLOCKS, 16, H): 12 per-block row vectors, zero-padded to 16.
    """
    H = HIDDEN
    hd = H // NUM_HEADS
    qs = jnp.float32(1.0 / np.sqrt(hd))
    HI = jax.lax.Precision.HIGHEST

    blk_w, blk_v = [], []
    for blk in p["blocks"]:
        wq = blk["w_qkv"][:, :H] * qs
        wk = blk["w_qkv"][:, H:2 * H]
        wv = blk["w_qkv"][:, 2 * H:]
        wmoe = jnp.dot(blk["e_w2"], blk["av_w"], precision=HI)
        bmoe = jnp.dot(blk["e_b2"], blk["av_w"], precision=HI) + blk["av_b"]
        blk_w.append(jnp.concatenate(
            [wq, wk, wv, blk["w_o"], blk["e_w1"], wmoe], axis=0))
        blk_v.append(jnp.concatenate([
            blk["ln1_w"], blk["ln1_b"],
            blk["b_qkv"][:, :H] * qs, blk["b_qkv"][:, H:2 * H],
            blk["b_qkv"][:, 2 * H:], blk["b_o"],
            blk["ln2_w"], blk["ln2_b"], blk["e_b1"], bmoe,
            blk["mln_w"], blk["mln_b"],
            jnp.zeros((4, H), jnp.float32)], axis=0))        # pad 12 -> 16 rows

    wff = p["fuse_w"][:H, :]
    wfc = p["fuse_w"][H:, :]
    ctx_tables = (p["user_emb"], p["pid_emb"], p["hour_emb"], p["dow_emb"],
                  p["hour_block_emb"], p["is_weekend_emb"])

    gtab = jnp.zeros((GT_ROWS, HIDDEN), jnp.float32)
    gtab = gtab.at[OFF_ITEM:OFF_ITEM + ITEM_NUM + 1].set(p["item_emb"])
    gtab = gtab.at[OFF_POS:OFF_POS + MAXLEN + 1].set(p["pos_emb"])
    for f, tbl in enumerate(ctx_tables):
        folded = jnp.dot(tbl, wfc[f * CTX_DIM:(f + 1) * CTX_DIM, :],
                         precision=HI)
        gtab = gtab.at[CTX_OFFSETS[f]:CTX_OFFSETS[f] + tbl.shape[0]].set(folded)
    bias_row = p["fuse_b"] + jnp.dot(p["last_ln_b"], wff, precision=HI)
    gtab = gtab.at[ROW_BIAS:ROW_BIAS + 1].set(bias_row)
    gtab = gtab.at[OFF_WFF:OFF_WFF + H].set(wff * p["last_ln_w"].reshape(H, 1))

    return dict(gtab=gtab,
                blk_w=jnp.stack(blk_w, 0),
                blk_v=jnp.stack(blk_v, 0))


# ------------------------------ forward (Pallas) -----------------------------
def sasrec_forward(kp, user_ids, log_seqs, item_ids, pid, hour, dow,
                   hour_block, is_weekend):
    B, T = log_seqs.shape
    # only tiny index reshapes stay outside; all gathers happen in-kernel
    seq_idx = log_seqs.reshape(B * T, 1).astype(jnp.int32)
    ctx_idx = jnp.stack([user_ids, pid, hour, dow, hour_block, is_weekend],
                        axis=1).astype(jnp.int32)
    item_idx = item_ids.reshape(B, 1).astype(jnp.int32)
    return run_fused(seq_idx, ctx_idx, item_idx, kp, batch=B, seqlen=T)


# ------------------------------ reference (pure JAX) --------------------------
def reference_forward(p, user_ids, log_seqs, item_ids, pid, hour, dow,
                      hour_block, is_weekend):
    B, T = log_seqs.shape
    H, nh = HIDDEN, NUM_HEADS
    hd = H // nh
    seqs = p["item_emb"][log_seqs] * jnp.float32(np.sqrt(H))
    poss = jnp.arange(1, T + 1, dtype=jnp.int32)[None, :] * \
        (log_seqs != 0).astype(jnp.int32)
    seqs = (seqs + p["pos_emb"][poss]).astype(jnp.float32)

    mask = jnp.tril(jnp.ones((T, T), bool))
    for blk in p["blocks"]:
        x = seqs
        q_in = _layer_norm(x, blk["ln1_w"], blk["ln1_b"], EPS_SAS)
        q = q_in @ blk["w_qkv"][:, :H] + blk["b_qkv"][:, :H]
        k = x @ blk["w_qkv"][:, H:2 * H] + blk["b_qkv"][:, H:2 * H]
        v = x @ blk["w_qkv"][:, 2 * H:] + blk["b_qkv"][:, 2 * H:]
        qh = q.reshape(B, T, nh, hd)
        kh = k.reshape(B, T, nh, hd)
        vh = v.reshape(B, T, nh, hd)
        s = jnp.einsum("bqhd,bkhd->bhqk", qh, kh) / np.sqrt(hd)
        s = jnp.where(mask, s, -1e30)
        s = s - s.max(-1, keepdims=True)
        pr = jnp.exp(s)
        pr = pr / pr.sum(-1, keepdims=True)
        attn = jnp.einsum("bhqk,bkhd->bqhd", pr, vh).reshape(B, T, H)
        mha = attn @ blk["w_o"] + blk["b_o"]
        seqs = q_in + mha
        x2 = _layer_norm(seqs, blk["ln2_w"], blk["ln2_b"], EPS_SAS)
        h1 = jax.nn.relu(x2 @ blk["e_w1"] + blk["e_b1"])
        e = h1 @ blk["e_w2"] + blk["e_b2"]
        fused = e @ blk["av_w"] + blk["av_b"]
        seqs = _layer_norm(x2 + fused, blk["mln_w"], blk["mln_b"], EPS_MOE)

    feats = _layer_norm(seqs, p["last_ln_w"], p["last_ln_b"], EPS_SAS)
    final = feats[:, -1, :]
    ctx = jnp.concatenate([
        p["user_emb"][user_ids], p["pid_emb"][pid], p["hour_emb"][hour],
        p["dow_emb"][dow], p["hour_block_emb"][hour_block],
        p["is_weekend_emb"][is_weekend]], axis=-1)
    fused_feat = jnp.concatenate([final, ctx], -1) @ p["fuse_w"] + p["fuse_b"]
    item = p["item_emb"][item_ids]
    return jnp.sum(fused_feat * item, axis=-1)


# ------------------------------------ main ------------------------------------
if __name__ == "__main__":
    key = jax.random.PRNGKey(0)
    pkey, dkey = jax.random.split(key)
    params = init_params(pkey)
    kparams = prepare_params(params)     # one-time packing / weight folding

    ks = jax.random.split(dkey, 8)
    log_seqs = jax.random.randint(ks[0], (BATCH, MAXLEN), 0, ITEM_NUM + 1)
    user_ids = jax.random.randint(ks[1], (BATCH,), 1, USER_NUM + 1)
    item_ids = jax.random.randint(ks[2], (BATCH,), 1, ITEM_NUM + 1)
    pid = jax.random.randint(ks[3], (BATCH,), 1, PID_SIZE + 1)
    hour = jax.random.randint(ks[4], (BATCH,), 0, 24)
    dow = jax.random.randint(ks[5], (BATCH,), 0, 7)
    hour_block = jax.random.randint(ks[6], (BATCH,), 0, 4)
    is_weekend = jax.random.randint(ks[7], (BATCH,), 0, 2)

    fwd = jax.jit(sasrec_forward)
    logits = fwd(kparams, user_ids, log_seqs, item_ids, pid,
                 hour, dow, hour_block, is_weekend)
    logits = jax.block_until_ready(logits)

    ref = reference_forward(params, user_ids, log_seqs, item_ids, pid,
                            hour, dow, hour_block, is_weekend)
    # tolerance accounts for MXU f32-pass rounding in the fused gather matmuls
    np.testing.assert_allclose(np.asarray(logits), np.asarray(ref),
                               rtol=5e-3, atol=5e-3)
    print("KERNEL_OK")
</pallas_src>

<mosaic_0001>
module attributes {stable_mosaic.version = 11 : i64} {
  func.func @sasrec_fused_kernel(%arg0: memref<16x1xi32, #tpu.memory_space<vmem>>, %arg1: memref<2x6xi32, #tpu.memory_space<vmem>>, %arg2: memref<2x1xi32, #tpu.memory_space<vmem>>, %arg3: memref<128x32xf32, #tpu.memory_space<vmem>>, %arg4: memref<2x192x32xf32, #tpu.memory_space<vmem>>, %arg5: memref<2x16x32xf32, #tpu.memory_space<vmem>>, %arg6: memref<2x1xf32, #tpu.memory_space<vmem>>) attributes {dimension_semantics = [], scalar_prefetch = 0 : i64, scratch_operands = 0 : i64, tpu.core_type = #tpu.core_type<tc>} {
    %c0 = arith.constant 0 : index
    %c0_0 = arith.constant 0 : index
    %0 = vector.load %arg3[%c0, %c0_0] : memref<128x32xf32, #tpu.memory_space<vmem>>, vector<128x32xf32>
    %c0_1 = arith.constant 0 : index
    %c0_2 = arith.constant 0 : index
    %1 = vector.load %arg0[%c0_1, %c0_2] : memref<16x1xi32, #tpu.memory_space<vmem>>, vector<16x1xi32>
    %2 = tpu.iota {dimensions = array<i32: 1>} : vector<16x128xi32>
    %3 = tpu.iota {dimensions = array<i32: 0>} : vector<16x1xi32>
    %c0_i32 = arith.constant 0 : i32
    %4 = vector.broadcast %c0_i32 : i32 to vector<16x1xi32>
    %c8_i32 = arith.constant 8 : i32
    %5 = vector.broadcast %c8_i32 : i32 to vector<16x1xi32>
    %6 = arith.cmpi sge, %3, %5 : vector<16x1xi32>
    %c1_i32 = arith.constant 1 : i32
    %c0_i32_3 = arith.constant 0 : i32
    %7 = vector.broadcast %c1_i32 : i32 to vector<16x1xi32>
    %8 = vector.broadcast %c0_i32_3 : i32 to vector<16x1xi32>
    %9 = arith.select %6, %7, %8 : vector<16x1xi1>, vector<16x1xi32>
    %10 = arith.addi %4, %9 : vector<16x1xi32>
    %c8_i32_4 = arith.constant 8 : i32
    %11 = vector.broadcast %c8_i32_4 : i32 to vector<16x1xi32>
    %12 = arith.muli %10, %11 : vector<16x1xi32>
    %13 = arith.subi %3, %12 : vector<16x1xi32>
    %c0_i32_5 = arith.constant 0 : i32
    %14 = vector.broadcast %c0_i32_5 : i32 to vector<16x1xi32>
    %15 = arith.cmpi ne, %1, %14 : vector<16x1xi32>
    %c25_i32 = arith.constant 25 : i32
    %16 = vector.broadcast %c25_i32 : i32 to vector<16x1xi32>
    %17 = arith.addi %13, %16 : vector<16x1xi32>
    %c24_i32 = arith.constant 24 : i32
    %18 = vector.broadcast %c24_i32 : i32 to vector<16x1xi32>
    %19 = arith.select %15, %17, %18 : vector<16x1xi1>, vector<16x1xi32>
    %c0_i32_6 = arith.constant 0 : i32
    %20 = vector.broadcast %c0_i32_6 : i32 to vector<16x1xi32>
    %21 = arith.addi %1, %20 : vector<16x1xi32>
    %22 = vector.broadcast %21 : vector<16x1xi32> to vector<16x128xi32>
    %23 = arith.cmpi eq, %2, %22 : vector<16x128xi32>
    %cst = arith.constant 5.65685415 : f32
    %cst_7 = arith.constant 0.000000e+00 : f32
    %24 = vector.broadcast %cst : f32 to vector<16x128xf32>
    %25 = vector.broadcast %cst_7 : f32 to vector<16x128xf32>
    %26 = arith.select %23, %24, %25 : vector<16x128xi1>, vector<16x128xf32>
    %27 = vector.broadcast %19 : vector<16x1xi32> to vector<16x128xi32>
    %28 = arith.cmpi eq, %2, %27 : vector<16x128xi32>
    %cst_8 = arith.constant 1.000000e+00 : f32
    %cst_9 = arith.constant 0.000000e+00 : f32
    %29 = vector.broadcast %cst_8 : f32 to vector<16x128xf32>
    %30 = vector.broadcast %cst_9 : f32 to vector<16x128xf32>
    %31 = arith.select %28, %29, %30 : vector<16x128xi1>, vector<16x128xf32>
    %32 = arith.addf %26, %31 : vector<16x128xf32>
    %cst_10 = arith.constant dense<0.000000e+00> : vector<16x32xf32>
    %33 = tpu.matmul %32, %0, %cst_10 {dimension_numbers = #tpu.dot_dimension_numbers<[1], [0], [0], [1], [0, 0, 1, 1], [], []>} : vector<16x128xf32>, vector<128x32xf32>, vector<16x32xf32> -> vector<16x32xf32>
    %34 = tpu.iota {dimensions = array<i32: 1>} : vector<2x128xi32>
    %c0_11 = arith.constant 0 : index
    %c0_12 = arith.constant 0 : index
    %35 = vector.load %arg1[%c0_11, %c0_12] : memref<2x6xi32, #tpu.memory_space<vmem>>, vector<2x6xi32>
    %c94_i32 = arith.constant 94 : i32
    %36 = vector.broadcast %c94_i32 : i32 to vector<2x128xi32>
    %37 = arith.cmpi eq, %34, %36 : vector<2x128xi32>
    %cst_13 = arith.constant 1.000000e+00 : f32
    %cst_14 = arith.constant 0.000000e+00 : f32
    %38 = vector.broadcast %cst_13 : f32 to vector<2x128xf32>
    %39 = vector.broadcast %cst_14 : f32 to vector<2x128xf32>
    %40 = arith.select %37, %38, %39 : vector<2x128xi1>, vector<2x128xf32>
    %41 = vector.extract_strided_slice %35 {offsets = [0, 0], sizes = [2, 1], strides = [1, 1]} : vector<2x6xi32> to vector<2x1xi32>
    %c40_i32 = arith.constant 40 : i32
    %42 = vector.broadcast %c40_i32 : i32 to vector<2x1xi32>
    %43 = arith.addi %41, %42 : vector<2x1xi32>
    %44 = vector.broadcast %43 : vector<2x1xi32> to vector<2x128xi32>
    %45 = arith.cmpi eq, %34, %44 : vector<2x128xi32>
    %cst_15 = arith.constant 1.000000e+00 : f32
    %cst_16 = arith.constant 0.000000e+00 : f32
    %46 = vector.broadcast %cst_15 : f32 to vector<2x128xf32>
    %47 = vector.broadcast %cst_16 : f32 to vector<2x128xf32>
    %48 = arith.select %45, %46, %47 : vector<2x128xi1>, vector<2x128xf32>
    %49 = arith.addf %40, %48 : vector<2x128xf32>
    %50 = vector.extract_strided_slice %35 {offsets = [0, 1], sizes = [2, 1], strides = [1, 1]} : vector<2x6xi32> to vector<2x1xi32>
    %c51_i32 = arith.constant 51 : i32
    %51 = vector.broadcast %c51_i32 : i32 to vector<2x1xi32>
    %52 = arith.addi %50, %51 : vector<2x1xi32>
    %53 = vector.broadcast %52 : vector<2x1xi32> to vector<2x128xi32>
    %54 = arith.cmpi eq, %34, %53 : vector<2x128xi32>
    %cst_17 = arith.constant 1.000000e+00 : f32
    %cst_18 = arith.constant 0.000000e+00 : f32
    %55 = vector.broadcast %cst_17 : f32 to vector<2x128xf32>
    %56 = vector.broadcast %cst_18 : f32 to vector<2x128xf32>
    %57 = arith.select %54, %55, %56 : vector<2x128xi1>, vector<2x128xf32>
    %58 = arith.addf %49, %57 : vector<2x128xf32>
    %59 = vector.extract_strided_slice %35 {offsets = [0, 2], sizes = [2, 1], strides = [1, 1]} : vector<2x6xi32> to vector<2x1xi32>
    %c57_i32 = arith.constant 57 : i32
    %60 = vector.broadcast %c57_i32 : i32 to vector<2x1xi32>
    %61 = arith.addi %59, %60 : vector<2x1xi32>
    %62 = vector.broadcast %61 : vector<2x1xi32> to vector<2x128xi32>
    %63 = arith.cmpi eq, %34, %62 : vector<2x128xi32>
    %cst_19 = arith.constant 1.000000e+00 : f32
    %cst_20 = arith.constant 0.000000e+00 : f32
    %64 = vector.broadcast %cst_19 : f32 to vector<2x128xf32>
    %65 = vector.broadcast %cst_20 : f32 to vector<2x128xf32>
    %66 = arith.select %63, %64, %65 : vector<2x128xi1>, vector<2x128xf32>
    %67 = arith.addf %58, %66 : vector<2x128xf32>
    %68 = vector.extract_strided_slice %35 {offsets = [0, 3], sizes = [2, 1], strides = [1, 1]} : vector<2x6xi32> to vector<2x1xi32>
    %c81_i32 = arith.constant 81 : i32
    %69 = vector.broadcast %c81_i32 : i32 to vector<2x1xi32>
    %70 = arith.addi %68, %69 : vector<2x1xi32>
    %71 = vector.broadcast %70 : vector<2x1xi32> to vector<2x128xi32>
    %72 = arith.cmpi eq, %34, %71 : vector<2x128xi32>
    %cst_21 = arith.constant 1.000000e+00 : f32
    %cst_22 = arith.constant 0.000000e+00 : f32
    %73 = vector.broadcast %cst_21 : f32 to vector<2x128xf32>
    %74 = vector.broadcast %cst_22 : f32 to vector<2x128xf32>
    %75 = arith.select %72, %73, %74 : vector<2x128xi1>, vector<2x128xf32>
    %76 = arith.addf %67, %75 : vector<2x128xf32>
    %77 = vector.extract_strided_slice %35 {offsets = [0, 4], sizes = [2, 1], strides = [1, 1]} : vector<2x6xi32> to vector<2x1xi32>
    %c88_i32 = arith.constant 88 : i32
    %78 = vector.broadcast %c88_i32 : i32 to vector<2x1xi32>
    %79 = arith.addi %77, %78 : vector<2x1xi32>
    %80 = vector.broadcast %79 : vector<2x1xi32> to vector<2x128xi32>
    %81 = arith.cmpi eq, %34, %80 : vector<2x128xi32>
    %cst_23 = arith.constant 1.000000e+00 : f32
    %cst_24 = arith.constant 0.000000e+00 : f32
    %82 = vector.broadcast %cst_23 : f32 to vector<2x128xf32>
    %83 = vector.broadcast %cst_24 : f32 to vector<2x128xf32>
    %84 = arith.select %81, %82, %83 : vector<2x128xi1>, vector<2x128xf32>
    %85 = arith.addf %76, %84 : vector<2x128xf32>
    %86 = vector.extract_strided_slice %35 {offsets = [0, 5], sizes = [2, 1], strides = [1, 1]} : vector<2x6xi32> to vector<2x1xi32>
    %c92_i32 = arith.constant 92 : i32
    %87 = vector.broadcast %c92_i32 : i32 to vector<2x1xi32>
    %88 = arith.addi %86, %87 : vector<2x1xi32>
    %89 = vector.broadcast %88 : vector<2x1xi32> to vector<2x128xi32>
    %90 = arith.cmpi eq, %34, %89 : vector<2x128xi32>
    %cst_25 = arith.constant 1.000000e+00 : f32
    %cst_26 = arith.constant 0.000000e+00 : f32
    %91 = vector.broadcast %cst_25 : f32 to vector<2x128xf32>
    %92 = vector.broadcast %cst_26 : f32 to vector<2x128xf32>
    %93 = arith.select %90, %91, %92 : vector<2x128xi1>, vector<2x128xf32>
    %94 = arith.addf %85, %93 : vector<2x128xf32>
    %cst_27 = arith.constant dense<0.000000e+00> : vector<2x32xf32>
    %95 = tpu.matmul %94, %0, %cst_27 {dimension_numbers = #tpu.dot_dimension_numbers<[1], [0], [0], [1], [0, 0, 1, 1], [], []>} : vector<2x128xf32>, vector<128x32xf32>, vector<2x32xf32> -> vector<2x32xf32>
    %c0_28 = arith.constant 0 : index
    %c0_29 = arith.constant 0 : index
    %96 = vector.load %arg2[%c0_28, %c0_29] : memref<2x1xi32, #tpu.memory_space<vmem>>, vector<2x1xi32>
    %c0_i32_30 = arith.constant 0 : i32
    %97 = vector.broadcast %c0_i32_30 : i32 to vector<2x1xi32>
    %98 = arith.addi %96, %97 : vector<2x1xi32>
    %99 = vector.broadcast %98 : vector<2x1xi32> to vector<2x128xi32>
    %100 = arith.cmpi eq, %34, %99 : vector<2x128xi32>
    %cst_31 = arith.constant 1.000000e+00 : f32
    %cst_32 = arith.constant 0.000000e+00 : f32
    %101 = vector.broadcast %cst_31 : f32 to vector<2x128xf32>
    %102 = vector.broadcast %cst_32 : f32 to vector<2x128xf32>
    %103 = arith.select %100, %101, %102 : vector<2x128xi1>, vector<2x128xf32>
    %cst_33 = arith.constant dense<0.000000e+00> : vector<2x32xf32>
    %104 = tpu.matmul %103, %0, %cst_33 {dimension_numbers = #tpu.dot_dimension_numbers<[1], [0], [0], [1], [0, 0, 1, 1], [], []>} : vector<2x128xf32>, vector<128x32xf32>, vector<2x32xf32> -> vector<2x32xf32>
    %105 = tpu.iota {dimensions = array<i32: 0>} : vector<16x16xi32>
    %106 = tpu.iota {dimensions = array<i32: 1>} : vector<16x16xi32>
    %c0_i32_34 = arith.constant 0 : i32
    %107 = vector.broadcast %c0_i32_34 : i32 to vector<16x16xi32>
    %108 = arith.cmpi sge, %105, %107 : vector<16x16xi32>
    %c8_i32_35 = arith.constant 8 : i32
    %109 = vector.broadcast %c8_i32_35 : i32 to vector<16x16xi32>
    %110 = arith.cmpi slt, %105, %109 : vector<16x16xi32>
    %111 = arith.andi %108, %110 : vector<16x16xi1>
    %c0_i32_36 = arith.constant 0 : i32
    %112 = vector.broadcast %c0_i32_36 : i32 to vector<16x16xi32>
    %113 = arith.cmpi sge, %106, %112 : vector<16x16xi32>
    %c8_i32_37 = arith.constant 8 : i32
    %114 = vector.broadcast %c8_i32_37 : i32 to vector<16x16xi32>
    %115 = arith.cmpi slt, %106, %114 : vector<16x16xi32>
    %116 = arith.andi %113, %115 : vector<16x16xi1>
    %117 = arith.andi %111, %116 : vector<16x16xi1>
    %c8_i32_38 = arith.constant 8 : i32
    %118 = vector.broadcast %c8_i32_38 : i32 to vector<16x16xi32>
    %119 = arith.cmpi sge, %105, %118 : vector<16x16xi32>
    %c16_i32 = arith.constant 16 : i32
    %120 = vector.broadcast %c16_i32 : i32 to vector<16x16xi32>
    %121 = arith.cmpi slt, %105, %120 : vector<16x16xi32>
    %122 = arith.andi %119, %121 : vector<16x16xi1>
    %c8_i32_39 = arith.constant 8 : i32
    %123 = vector.broadcast %c8_i32_39 : i32 to vector<16x16xi32>
    %124 = arith.cmpi sge, %106, %123 : vector<16x16xi32>
    %c16_i32_40 = arith.constant 16 : i32
    %125 = vector.broadcast %c16_i32_40 : i32 to vector<16x16xi32>
    %126 = arith.cmpi slt, %106, %125 : vector<16x16xi32>
    %127 = arith.andi %124, %126 : vector<16x16xi1>
    %128 = arith.andi %122, %127 : vector<16x16xi1>
    %129 = arith.ori %117, %128 : vector<16x16xi1>
    %130 = arith.cmpi sle, %106, %105 : vector<16x16xi32>
    %131 = arith.andi %129, %130 : vector<16x16xi1>
    %cst_41 = arith.constant 0.000000e+00 : f32
    %cst_42 = arith.constant -1.000000e+30 : f32
    %132 = vector.broadcast %cst_41 : f32 to vector<16x16xf32>
    %133 = vector.broadcast %cst_42 : f32 to vector<16x16xf32>
    %134 = arith.select %131, %132, %133 : vector<16x16xi1>, vector<16x16xf32>
    %c0_43 = arith.constant 0 : index
    %c0_44 = arith.constant 0 : index
    %c0_45 = arith.constant 0 : index
    %135 = vector.load %arg4[%c0_43, %c0_44, %c0_45] : memref<2x192x32xf32, #tpu.memory_space<vmem>>, vector<1x192x32xf32>
    %136 = vector.shape_cast %135 : vector<1x192x32xf32> to vector<192x32xf32>
    %c0_46 = arith.constant 0 : index
    %c0_47 = arith.constant 0 : index
    %c0_48 = arith.constant 0 : index
    %137 = vector.load %arg5[%c0_46, %c0_47, %c0_48] : memref<2x16x32xf32, #tpu.memory_space<vmem>>, vector<1x16x32xf32>
    %138 = vector.shape_cast %137 : vector<1x16x32xf32> to vector<16x32xf32>
    %139 = vector.extract_strided_slice %136 {offsets = [0, 0], sizes = [32, 32], strides = [1, 1]} : vector<192x32xf32> to vector<32x32xf32>
    %140 = vector.extract_strided_slice %136 {offsets = [32, 0], sizes = [32, 32], strides = [1, 1]} : vector<192x32xf32> to vector<32x32xf32>
    %141 = vector.extract_strided_slice %136 {offsets = [64, 0], sizes = [32, 32], strides = [1, 1]} : vector<192x32xf32> to vector<32x32xf32>
    %142 = vector.extract_strided_slice %136 {offsets = [96, 0], sizes = [32, 32], strides = [1, 1]} : vector<192x32xf32> to vector<32x32xf32>
    %143 = vector.extract_strided_slice %136 {offsets = [128, 0], sizes = [32, 32], strides = [1, 1]} : vector<192x32xf32> to vector<32x32xf32>
    %144 = vector.extract_strided_slice %136 {offsets = [160, 0], sizes = [32, 32], strides = [1, 1]} : vector<192x32xf32> to vector<32x32xf32>
    %145 = vector.extract_strided_slice %138 {offsets = [0, 0], sizes = [1, 32], strides = [1, 1]} : vector<16x32xf32> to vector<1x32xf32>
    %146 = vector.extract_strided_slice %138 {offsets = [1, 0], sizes = [1, 32], strides = [1, 1]} : vector<16x32xf32> to vector<1x32xf32>
    %147 = vector.extract_strided_slice %138 {offsets = [2, 0], sizes = [1, 32], strides = [1, 1]} : vector<16x32xf32> to vector<1x32xf32>
    %148 = vector.extract_strided_slice %138 {offsets = [3, 0], sizes = [1, 32], strides = [1, 1]} : vector<16x32xf32> to vector<1x32xf32>
    %149 = vector.extract_strided_slice %138 {offsets = [4, 0], sizes = [1, 32], strides = [1, 1]} : vector<16x32xf32> to vector<1x32xf32>
    %150 = vector.extract_strided_slice %138 {offsets = [5, 0], sizes = [1, 32], strides = [1, 1]} : vector<16x32xf32> to vector<1x32xf32>
    %151 = vector.extract_strided_slice %138 {offsets = [6, 0], sizes = [1, 32], strides = [1, 1]} : vector<16x32xf32> to vector<1x32xf32>
    %152 = vector.extract_strided_slice %138 {offsets = [7, 0], sizes = [1, 32], strides = [1, 1]} : vector<16x32xf32> to vector<1x32xf32>
    %153 = vector.extract_strided_slice %138 {offsets = [8, 0], sizes = [1, 32], strides = [1, 1]} : vector<16x32xf32> to vector<1x32xf32>
    %154 = vector.extract_strided_slice %138 {offsets = [9, 0], sizes = [1, 32], strides = [1, 1]} : vector<16x32xf32> to vector<1x32xf32>
    %155 = vector.extract_strided_slice %138 {offsets = [10, 0], sizes = [1, 32], strides = [1, 1]} : vector<16x32xf32> to vector<1x32xf32>
    %156 = vector.extract_strided_slice %138 {offsets = [11, 0], sizes = [1, 32], strides = [1, 1]} : vector<16x32xf32> to vector<1x32xf32>
    %cst_49 = arith.constant dense<0.000000e+00> : vector<16xf32>
    %157 = vector.multi_reduction <add>, %33, %cst_49 [1] : vector<16x32xf32> to vector<16xf32>
    %158 = vector.shape_cast %157 : vector<16xf32> to vector<16x1xf32>
    %cst_50 = arith.constant 3.200000e+01 : f32
    %159 = vector.broadcast %cst_50 : f32 to vector<16x1xf32>
    %160 = arith.divf %158, %159 : vector<16x1xf32>
    %161 = vector.broadcast %160 : vector<16x1xf32> to vector<16x32xf32>
    %162 = arith.subf %33, %161 : vector<16x32xf32>
    %163 = arith.mulf %162, %162 : vector<16x32xf32>
    %cst_51 = arith.constant dense<0.000000e+00> : vector<16xf32>
    %164 = vector.multi_reduction <add>, %163, %cst_51 [1] : vector<16x32xf32> to vector<16xf32>
    %165 = vector.shape_cast %164 : vector<16xf32> to vector<16x1xf32>
    %cst_52 = arith.constant 3.200000e+01 : f32
    %166 = vector.broadcast %cst_52 : f32 to vector<16x1xf32>
    %167 = arith.divf %165, %166 : vector<16x1xf32>
    %168 = vector.broadcast %160 : vector<16x1xf32> to vector<16x32xf32>
    %169 = arith.subf %33, %168 : vector<16x32xf32>
    %cst_53 = arith.constant 9.99999993E-9 : f32
    %170 = vector.broadcast %cst_53 : f32 to vector<16x1xf32>
    %171 = arith.addf %167, %170 : vector<16x1xf32>
    %172 = math.rsqrt %171 : vector<16x1xf32>
    %173 = vector.broadcast %172 : vector<16x1xf32> to vector<16x32xf32>
    %174 = arith.mulf %169, %173 : vector<16x32xf32>
    %175 = vector.broadcast %145 : vector<1x32xf32> to vector<16x32xf32>
    %176 = arith.mulf %174, %175 : vector<16x32xf32>
    %177 = vector.broadcast %146 : vector<1x32xf32> to vector<16x32xf32>
    %178 = arith.addf %176, %177 : vector<16x32xf32>
    %cst_54 = arith.constant dense<0.000000e+00> : vector<16x32xf32>
    %179 = tpu.matmul %178, %139, %cst_54 {dimension_numbers = #tpu.dot_dimension_numbers<[1], [0], [0], [1], [0, 0, 1, 1], [], []>} : vector<16x32xf32>, vector<32x32xf32>, vector<16x32xf32> -> vector<16x32xf32>
    %180 = vector.broadcast %147 : vector<1x32xf32> to vector<16x32xf32>
    %181 = arith.addf %179, %180 : vector<16x32xf32>
    %cst_55 = arith.constant dense<0.000000e+00> : vector<16x32xf32>
    %182 = tpu.matmul %33, %140, %cst_55 {dimension_numbers = #tpu.dot_dimension_numbers<[1], [0], [0], [1], [0, 0, 1, 1], [], []>} : vector<16x32xf32>, vector<32x32xf32>, vector<16x32xf32> -> vector<16x32xf32>
    %183 = vector.broadcast %148 : vector<1x32xf32> to vector<16x32xf32>
    %184 = arith.addf %182, %183 : vector<16x32xf32>
    %cst_56 = arith.constant dense<0.000000e+00> : vector<16x32xf32>
    %185 = tpu.matmul %33, %141, %cst_56 {dimension_numbers = #tpu.dot_dimension_numbers<[1], [0], [0], [1], [0, 0, 1, 1], [], []>} : vector<16x32xf32>, vector<32x32xf32>, vector<16x32xf32> -> vector<16x32xf32>
    %186 = vector.broadcast %149 : vector<1x32xf32> to vector<16x32xf32>
    %187 = arith.addf %185, %186 : vector<16x32xf32>
    %188 = vector.extract_strided_slice %181 {offsets = [0, 0], sizes = [16, 16], strides = [1, 1]} : vector<16x32xf32> to vector<16x16xf32>
    %189 = vector.extract_strided_slice %184 {offsets = [0, 0], sizes = [16, 16], strides = [1, 1]} : vector<16x32xf32> to vector<16x16xf32>
    %cst_57 = arith.constant dense<0.000000e+00> : vector<16x16xf32>
    %190 = tpu.matmul %188, %189, %cst_57 {dimension_numbers = #tpu.dot_dimension_numbers<[1], [1], [0], [0], [0, 0, 1, 0], [], []>} : vector<16x16xf32>, vector<16x16xf32>, vector<16x16xf32> -> vector<16x16xf32>
    %191 = arith.addf %190, %134 : vector<16x16xf32>
    %cst_58 = arith.constant dense<0xFF800000> : vector<16xf32>
    %192 = vector.multi_reduction <maximumf>, %191, %cst_58 [1] : vector<16x16xf32> to vector<16xf32>
    %193 = vector.shape_cast %192 : vector<16xf32> to vector<16x1xf32>
    %194 = vector.broadcast %193 : vector<16x1xf32> to vector<16x16xf32>
    %195 = arith.subf %191, %194 : vector<16x16xf32>
    %196 = math.exp %195 : vector<16x16xf32>
    %cst_59 = arith.constant dense<0.000000e+00> : vector<16xf32>
    %197 = vector.multi_reduction <add>, %196, %cst_59 [1] : vector<16x16xf32> to vector<16xf32>
    %198 = vector.shape_cast %197 : vector<16xf32> to vector<16x1xf32>
    %199 = vector.broadcast %198 : vector<16x1xf32> to vector<16x16xf32>
    %200 = arith.divf %196, %199 : vector<16x16xf32>
    %201 = vector.extract_strided_slice %187 {offsets = [0, 0], sizes = [16, 16], strides = [1, 1]} : vector<16x32xf32> to vector<16x16xf32>
    %cst_60 = arith.constant dense<0.000000e+00> : vector<16x16xf32>
    %202 = tpu.matmul %200, %201, %cst_60 {dimension_numbers = #tpu.dot_dimension_numbers<[1], [0], [0], [1], [0, 0, 1, 1], [], []>} : vector<16x16xf32>, vector<16x16xf32>, vector<16x16xf32> -> vector<16x16xf32>
    %203 = vector.extract_strided_slice %142 {offsets = [0, 0], sizes = [16, 32], strides = [1, 1]} : vector<32x32xf32> to vector<16x32xf32>
    %cst_61 = arith.constant dense<0.000000e+00> : vector<16x32xf32>
    %204 = tpu.matmul %202, %203, %cst_61 {dimension_numbers = #tpu.dot_dimension_numbers<[1], [0], [0], [1], [0, 0, 1, 1], [], []>} : vector<16x16xf32>, vector<16x32xf32>, vector<16x32xf32> -> vector<16x32xf32>
    %205 = vector.extract_strided_slice %181 {offsets = [0, 16], sizes = [16, 16], strides = [1, 1]} : vector<16x32xf32> to vector<16x16xf32>
    %206 = vector.extract_strided_slice %184 {offsets = [0, 16], sizes = [16, 16], strides = [1, 1]} : vector<16x32xf32> to vector<16x16xf32>
    %cst_62 = arith.constant dense<0.000000e+00> : vector<16x16xf32>
    %207 = tpu.matmul %205, %206, %cst_62 {dimension_numbers = #tpu.dot_dimension_numbers<[1], [1], [0], [0], [0, 0, 1, 0], [], []>} : vector<16x16xf32>, vector<16x16xf32>, vector<16x16xf32> -> vector<16x16xf32>
    %208 = arith.addf %207, %134 : vector<16x16xf32>
    %cst_63 = arith.constant dense<0xFF800000> : vector<16xf32>
    %209 = vector.multi_reduction <maximumf>, %208, %cst_63 [1] : vector<16x16xf32> to vector<16xf32>
    %210 = vector.shape_cast %209 : vector<16xf32> to vector<16x1xf32>
    %211 = vector.broadcast %210 : vector<16x1xf32> to vector<16x16xf32>
    %212 = arith.subf %208, %211 : vector<16x16xf32>
    %213 = math.exp %212 : vector<16x16xf32>
    %cst_64 = arith.constant dense<0.000000e+00> : vector<16xf32>
    %214 = vector.multi_reduction <add>, %213, %cst_64 [1] : vector<16x16xf32> to vector<16xf32>
    %215 = vector.shape_cast %214 : vector<16xf32> to vector<16x1xf32>
    %216 = vector.broadcast %215 : vector<16x1xf32> to vector<16x16xf32>
    %217 = arith.divf %213, %216 : vector<16x16xf32>
    %218 = vector.extract_strided_slice %187 {offsets = [0, 16], sizes = [16, 16], strides = [1, 1]} : vector<16x32xf32> to vector<16x16xf32>
    %cst_65 = arith.constant dense<0.000000e+00> : vector<16x16xf32>
    %219 = tpu.matmul %217, %218, %cst_65 {dimension_numbers = #tpu.dot_dimension_numbers<[1], [0], [0], [1], [0, 0, 1, 1], [], []>} : vector<16x16xf32>, vector<16x16xf32>, vector<16x16xf32> -> vector<16x16xf32>
    %220 = vector.extract_strided_slice %142 {offsets = [16, 0], sizes = [16, 32], strides = [1, 1]} : vector<32x32xf32> to vector<16x32xf32>
    %cst_66 = arith.constant dense<0.000000e+00> : vector<16x32xf32>
    %221 = tpu.matmul %219, %220, %cst_66 {dimension_numbers = #tpu.dot_dimension_numbers<[1], [0], [0], [1], [0, 0, 1, 1], [], []>} : vector<16x16xf32>, vector<16x32xf32>, vector<16x32xf32> -> vector<16x32xf32>
    %222 = arith.addf %204, %221 : vector<16x32xf32>
    %223 = arith.addf %178, %222 : vector<16x32xf32>
    %224 = vector.broadcast %150 : vector<1x32xf32> to vector<16x32xf32>
    %225 = arith.addf %223, %224 : vector<16x32xf32>
    %cst_67 = arith.constant dense<0.000000e+00> : vector<16xf32>
    %226 = vector.multi_reduction <add>, %225, %cst_67 [1] : vector<16x32xf32> to vector<16xf32>
    %227 = vector.shape_cast %226 : vector<16xf32> to vector<16x1xf32>
    %cst_68 = arith.constant 3.200000e+01 : f32
    %228 = vector.broadcast %cst_68 : f32 to vector<16x1xf32>
    %229 = arith.divf %227, %228 : vector<16x1xf32>
    %230 = vector.broadcast %229 : vector<16x1xf32> to vector<16x32xf32>
    %231 = arith.subf %225, %230 : vector<16x32xf32>
    %232 = arith.mulf %231, %231 : vector<16x32xf32>
    %cst_69 = arith.constant dense<0.000000e+00> : vector<16xf32>
    %233 = vector.multi_reduction <add>, %232, %cst_69 [1] : vector<16x32xf32> to vector<16xf32>
    %234 = vector.shape_cast %233 : vector<16xf32> to vector<16x1xf32>
    %cst_70 = arith.constant 3.200000e+01 : f32
    %235 = vector.broadcast %cst_70 : f32 to vector<16x1xf32>
    %236 = arith.divf %234, %235 : vector<16x1xf32>
    %237 = vector.broadcast %229 : vector<16x1xf32> to vector<16x32xf32>
    %238 = arith.subf %225, %237 : vector<16x32xf32>
    %cst_71 = arith.constant 9.99999993E-9 : f32
    %239 = vector.broadcast %cst_71 : f32 to vector<16x1xf32>
    %240 = arith.addf %236, %239 : vector<16x1xf32>
    %241 = math.rsqrt %240 : vector<16x1xf32>
    %242 = vector.broadcast %241 : vector<16x1xf32> to vector<16x32xf32>
    %243 = arith.mulf %238, %242 : vector<16x32xf32>
    %244 = vector.broadcast %151 : vector<1x32xf32> to vector<16x32xf32>
    %245 = arith.mulf %243, %244 : vector<16x32xf32>
    %246 = vector.broadcast %152 : vector<1x32xf32> to vector<16x32xf32>
    %247 = arith.addf %245, %246 : vector<16x32xf32>
    %cst_72 = arith.constant dense<0.000000e+00> : vector<16x32xf32>
    %248 = tpu.matmul %247, %143, %cst_72 {dimension_numbers = #tpu.dot_dimension_numbers<[1], [0], [0], [1], [0, 0, 1, 1], [], []>} : vector<16x32xf32>, vector<32x32xf32>, vector<16x32xf32> -> vector<16x32xf32>
    %249 = vector.broadcast %153 : vector<1x32xf32> to vector<16x32xf32>
    %250 = arith.addf %248, %249 : vector<16x32xf32>
    %cst_73 = arith.constant 0.000000e+00 : f32
    %251 = vector.broadcast %cst_73 : f32 to vector<16x32xf32>
    %252 = arith.maximumf %250, %251 : vector<16x32xf32>
    %cst_74 = arith.constant dense<0.000000e+00> : vector<16x32xf32>
    %253 = tpu.matmul %252, %144, %cst_74 {dimension_numbers = #tpu.dot_dimension_numbers<[1], [0], [0], [1], [0, 0, 1, 1], [], []>} : vector<16x32xf32>, vector<32x32xf32>, vector<16x32xf32> -> vector<16x32xf32>
    %254 = vector.broadcast %154 : vector<1x32xf32> to vector<16x32xf32>
    %255 = arith.addf %253, %254 : vector<16x32xf32>
    %256 = arith.addf %247, %255 : vector<16x32xf32>
    %cst_75 = arith.constant dense<0.000000e+00> : vector<16xf32>
    %257 = vector.multi_reduction <add>, %256, %cst_75 [1] : vector<16x32xf32> to vector<16xf32>
    %258 = vector.shape_cast %257 : vector<16xf32> to vector<16x1xf32>
    %cst_76 = arith.constant 3.200000e+01 : f32
    %259 = vector.broadcast %cst_76 : f32 to vector<16x1xf32>
    %260 = arith.divf %258, %259 : vector<16x1xf32>
    %261 = vector.broadcast %260 : vector<16x1xf32> to vector<16x32xf32>
    %262 = arith.subf %256, %261 : vector<16x32xf32>
    %263 = arith.mulf %262, %262 : vector<16x32xf32>
    %cst_77 = arith.constant dense<0.000000e+00> : vector<16xf32>
    %264 = vector.multi_reduction <add>, %263, %cst_77 [1] : vector<16x32xf32> to vector<16xf32>
    %265 = vector.shape_cast %264 : vector<16xf32> to vector<16x1xf32>
    %cst_78 = arith.constant 3.200000e+01 : f32
    %266 = vector.broadcast %cst_78 : f32 to vector<16x1xf32>
    %267 = arith.divf %265, %266 : vector<16x1xf32>
    %268 = vector.broadcast %260 : vector<16x1xf32> to vector<16x32xf32>
    %269 = arith.subf %256, %268 : vector<16x32xf32>
    %cst_79 = arith.constant 9.99999974E-6 : f32
    %270 = vector.broadcast %cst_79 : f32 to vector<16x1xf32>
    %271 = arith.addf %267, %270 : vector<16x1xf32>
    %272 = math.rsqrt %271 : vector<16x1xf32>
    %273 = vector.broadcast %272 : vector<16x1xf32> to vector<16x32xf32>
    %274 = arith.mulf %269, %273 : vector<16x32xf32>
    %275 = vector.broadcast %155 : vector<1x32xf32> to vector<16x32xf32>
    %276 = arith.mulf %274, %275 : vector<16x32xf32>
    %277 = vector.broadcast %156 : vector<1x32xf32> to vector<16x32xf32>
    %278 = arith.addf %276, %277 : vector<16x32xf32>
    %c1 = arith.constant 1 : index
    %c0_80 = arith.constant 0 : index
    %c0_81 = arith.constant 0 : index
    %279 = vector.load %arg4[%c1, %c0_80, %c0_81] : memref<2x192x32xf32, #tpu.memory_space<vmem>>, vector<1x192x32xf32>
    %280 = vector.shape_cast %279 : vector<1x192x32xf32> to vector<192x32xf32>
    %c1_82 = arith.constant 1 : index
    %c0_83 = arith.constant 0 : index
    %c0_84 = arith.constant 0 : index
    %281 = vector.load %arg5[%c1_82, %c0_83, %c0_84] : memref<2x16x32xf32, #tpu.memory_space<vmem>>, vector<1x16x32xf32>
    %282 = vector.shape_cast %281 : vector<1x16x32xf32> to vector<16x32xf32>
    %283 = vector.extract_strided_slice %280 {offsets = [0, 0], sizes = [32, 32], strides = [1, 1]} : vector<192x32xf32> to vector<32x32xf32>
    %284 = vector.extract_strided_slice %280 {offsets = [32, 0], sizes = [32, 32], strides = [1, 1]} : vector<192x32xf32> to vector<32x32xf32>
    %285 = vector.extract_strided_slice %280 {offsets = [64, 0], sizes = [32, 32], strides = [1, 1]} : vector<192x32xf32> to vector<32x32xf32>
    %286 = vector.extract_strided_slice %280 {offsets = [96, 0], sizes = [32, 32], strides = [1, 1]} : vector<192x32xf32> to vector<32x32xf32>
    %287 = vector.extract_strided_slice %280 {offsets = [128, 0], sizes = [32, 32], strides = [1, 1]} : vector<192x32xf32> to vector<32x32xf32>
    %288 = vector.extract_strided_slice %280 {offsets = [160, 0], sizes = [32, 32], strides = [1, 1]} : vector<192x32xf32> to vector<32x32xf32>
    %289 = vector.extract_strided_slice %282 {offsets = [0, 0], sizes = [1, 32], strides = [1, 1]} : vector<16x32xf32> to vector<1x32xf32>
    %290 = vector.extract_strided_slice %282 {offsets = [1, 0], sizes = [1, 32], strides = [1, 1]} : vector<16x32xf32> to vector<1x32xf32>
    %291 = vector.extract_strided_slice %282 {offsets = [2, 0], sizes = [1, 32], strides = [1, 1]} : vector<16x32xf32> to vector<1x32xf32>
    %292 = vector.extract_strided_slice %282 {offsets = [3, 0], sizes = [1, 32], strides = [1, 1]} : vector<16x32xf32> to vector<1x32xf32>
    %293 = vector.extract_strided_slice %282 {offsets = [4, 0], sizes = [1, 32], strides = [1, 1]} : vector<16x32xf32> to vector<1x32xf32>
    %294 = vector.extract_strided_slice %282 {offsets = [5, 0], sizes = [1, 32], strides = [1, 1]} : vector<16x32xf32> to vector<1x32xf32>
    %295 = vector.extract_strided_slice %282 {offsets = [6, 0], sizes = [1, 32], strides = [1, 1]} : vector<16x32xf32> to vector<1x32xf32>
    %296 = vector.extract_strided_slice %282 {offsets = [7, 0], sizes = [1, 32], strides = [1, 1]} : vector<16x32xf32> to vector<1x32xf32>
    %297 = vector.extract_strided_slice %282 {offsets = [8, 0], sizes = [1, 32], strides = [1, 1]} : vector<16x32xf32> to vector<1x32xf32>
    %298 = vector.extract_strided_slice %282 {offsets = [9, 0], sizes = [1, 32], strides = [1, 1]} : vector<16x32xf32> to vector<1x32xf32>
    %299 = vector.extract_strided_slice %282 {offsets = [10, 0], sizes = [1, 32], strides = [1, 1]} : vector<16x32xf32> to vector<1x32xf32>
    %300 = vector.extract_strided_slice %282 {offsets = [11, 0], sizes = [1, 32], strides = [1, 1]} : vector<16x32xf32> to vector<1x32xf32>
    %cst_85 = arith.constant dense<0.000000e+00> : vector<16xf32>
    %301 = vector.multi_reduction <add>, %278, %cst_85 [1] : vector<16x32xf32> to vector<16xf32>
    %302 = vector.shape_cast %301 : vector<16xf32> to vector<16x1xf32>
    %cst_86 = arith.constant 3.200000e+01 : f32
    %303 = vector.broadcast %cst_86 : f32 to vector<16x1xf32>
    %304 = arith.divf %302, %303 : vector<16x1xf32>
    %305 = vector.broadcast %304 : vector<16x1xf32> to vector<16x32xf32>
    %306 = arith.subf %278, %305 : vector<16x32xf32>
    %307 = arith.mulf %306, %306 : vector<16x32xf32>
    %cst_87 = arith.constant dense<0.000000e+00> : vector<16xf32>
    %308 = vector.multi_reduction <add>, %307, %cst_87 [1] : vector<16x32xf32> to vector<16xf32>
    %309 = vector.shape_cast %308 : vector<16xf32> to vector<16x1xf32>
    %cst_88 = arith.constant 3.200000e+01 : f32
    %310 = vector.broadcast %cst_88 : f32 to vector<16x1xf32>
    %311 = arith.divf %309, %310 : vector<16x1xf32>
    %312 = vector.broadcast %304 : vector<16x1xf32> to vector<16x32xf32>
    %313 = arith.subf %278, %312 : vector<16x32xf32>
    %cst_89 = arith.constant 9.99999993E-9 : f32
    %314 = vector.broadcast %cst_89 : f32 to vector<16x1xf32>
    %315 = arith.addf %311, %314 : vector<16x1xf32>
    %316 = math.rsqrt %315 : vector<16x1xf32>
    %317 = vector.broadcast %316 : vector<16x1xf32> to vector<16x32xf32>
    %318 = arith.mulf %313, %317 : vector<16x32xf32>
    %319 = vector.broadcast %289 : vector<1x32xf32> to vector<16x32xf32>
    %320 = arith.mulf %318, %319 : vector<16x32xf32>
    %321 = vector.broadcast %290 : vector<1x32xf32> to vector<16x32xf32>
    %322 = arith.addf %320, %321 : vector<16x32xf32>
    %cst_90 = arith.constant dense<0.000000e+00> : vector<16x32xf32>
    %323 = tpu.matmul %322, %283, %cst_90 {dimension_numbers = #tpu.dot_dimension_numbers<[1], [0], [0], [1], [0, 0, 1, 1], [], []>} : vector<16x32xf32>, vector<32x32xf32>, vector<16x32xf32> -> vector<16x32xf32>
    %324 = vector.broadcast %291 : vector<1x32xf32> to vector<16x32xf32>
    %325 = arith.addf %323, %324 : vector<16x32xf32>
    %cst_91 = arith.constant dense<0.000000e+00> : vector<16x32xf32>
    %326 = tpu.matmul %278, %284, %cst_91 {dimension_numbers = #tpu.dot_dimension_numbers<[1], [0], [0], [1], [0, 0, 1, 1], [], []>} : vector<16x32xf32>, vector<32x32xf32>, vector<16x32xf32> -> vector<16x32xf32>
    %327 = vector.broadcast %292 : vector<1x32xf32> to vector<16x32xf32>
    %328 = arith.addf %326, %327 : vector<16x32xf32>
    %cst_92 = arith.constant dense<0.000000e+00> : vector<16x32xf32>
    %329 = tpu.matmul %278, %285, %cst_92 {dimension_numbers = #tpu.dot_dimension_numbers<[1], [0], [0], [1], [0, 0, 1, 1], [], []>} : vector<16x32xf32>, vector<32x32xf32>, vector<16x32xf32> -> vector<16x32xf32>
    %330 = vector.broadcast %293 : vector<1x32xf32> to vector<16x32xf32>
    %331 = arith.addf %329, %330 : vector<16x32xf32>
    %332 = vector.extract_strided_slice %325 {offsets = [0, 0], sizes = [16, 16], strides = [1, 1]} : vector<16x32xf32> to vector<16x16xf32>
    %333 = vector.extract_strided_slice %328 {offsets = [0, 0], sizes = [16, 16], strides = [1, 1]} : vector<16x32xf32> to vector<16x16xf32>
    %cst_93 = arith.constant dense<0.000000e+00> : vector<16x16xf32>
    %334 = tpu.matmul %332, %333, %cst_93 {dimension_numbers = #tpu.dot_dimension_numbers<[1], [1], [0], [0], [0, 0, 1, 0], [], []>} : vector<16x16xf32>, vector<16x16xf32>, vector<16x16xf32> -> vector<16x16xf32>
    %335 = arith.addf %334, %134 : vector<16x16xf32>
    %cst_94 = arith.constant dense<0xFF800000> : vector<16xf32>
    %336 = vector.multi_reduction <maximumf>, %335, %cst_94 [1] : vector<16x16xf32> to vector<16xf32>
    %337 = vector.shape_cast %336 : vector<16xf32> to vector<16x1xf32>
    %338 = vector.broadcast %337 : vector<16x1xf32> to vector<16x16xf32>
    %339 = arith.subf %335, %338 : vector<16x16xf32>
    %340 = math.exp %339 : vector<16x16xf32>
    %cst_95 = arith.constant dense<0.000000e+00> : vector<16xf32>
    %341 = vector.multi_reduction <add>, %340, %cst_95 [1] : vector<16x16xf32> to vector<16xf32>
    %342 = vector.shape_cast %341 : vector<16xf32> to vector<16x1xf32>
    %343 = vector.broadcast %342 : vector<16x1xf32> to vector<16x16xf32>
    %344 = arith.divf %340, %343 : vector<16x16xf32>
    %345 = vector.extract_strided_slice %331 {offsets = [0, 0], sizes = [16, 16], strides = [1, 1]} : vector<16x32xf32> to vector<16x16xf32>
    %cst_96 = arith.constant dense<0.000000e+00> : vector<16x16xf32>
    %346 = tpu.matmul %344, %345, %cst_96 {dimension_numbers = #tpu.dot_dimension_numbers<[1], [0], [0], [1], [0, 0, 1, 1], [], []>} : vector<16x16xf32>, vector<16x16xf32>, vector<16x16xf32> -> vector<16x16xf32>
    %347 = vector.extract_strided_slice %286 {offsets = [0, 0], sizes = [16, 32], strides = [1, 1]} : vector<32x32xf32> to vector<16x32xf32>
    %cst_97 = arith.constant dense<0.000000e+00> : vector<16x32xf32>
    %348 = tpu.matmul %346, %347, %cst_97 {dimension_numbers = #tpu.dot_dimension_numbers<[1], [0], [0], [1], [0, 0, 1, 1], [], []>} : vector<16x16xf32>, vector<16x32xf32>, vector<16x32xf32> -> vector<16x32xf32>
    %349 = vector.extract_strided_slice %325 {offsets = [0, 16], sizes = [16, 16], strides = [1, 1]} : vector<16x32xf32> to vector<16x16xf32>
    %350 = vector.extract_strided_slice %328 {offsets = [0, 16], sizes = [16, 16], strides = [1, 1]} : vector<16x32xf32> to vector<16x16xf32>
    %cst_98 = arith.constant dense<0.000000e+00> : vector<16x16xf32>
    %351 = tpu.matmul %349, %350, %cst_98 {dimension_numbers = #tpu.dot_dimension_numbers<[1], [1], [0], [0], [0, 0, 1, 0], [], []>} : vector<16x16xf32>, vector<16x16xf32>, vector<16x16xf32> -> vector<16x16xf32>
    %352 = arith.addf %351, %134 : vector<16x16xf32>
    %cst_99 = arith.constant dense<0xFF800000> : vector<16xf32>
    %353 = vector.multi_reduction <maximumf>, %352, %cst_99 [1] : vector<16x16xf32> to vector<16xf32>
    %354 = vector.shape_cast %353 : vector<16xf32> to vector<16x1xf32>
    %355 = vector.broadcast %354 : vector<16x1xf32> to vector<16x16xf32>
    %356 = arith.subf %352, %355 : vector<16x16xf32>
    %357 = math.exp %356 : vector<16x16xf32>
    %cst_100 = arith.constant dense<0.000000e+00> : vector<16xf32>
    %358 = vector.multi_reduction <add>, %357, %cst_100 [1] : vector<16x16xf32> to vector<16xf32>
    %359 = vector.shape_cast %358 : vector<16xf32> to vector<16x1xf32>
    %360 = vector.broadcast %359 : vector<16x1xf32> to vector<16x16xf32>
    %361 = arith.divf %357, %360 : vector<16x16xf32>
    %362 = vector.extract_strided_slice %331 {offsets = [0, 16], sizes = [16, 16], strides = [1, 1]} : vector<16x32xf32> to vector<16x16xf32>
    %cst_101 = arith.constant dense<0.000000e+00> : vector<16x16xf32>
    %363 = tpu.matmul %361, %362, %cst_101 {dimension_numbers = #tpu.dot_dimension_numbers<[1], [0], [0], [1], [0, 0, 1, 1], [], []>} : vector<16x16xf32>, vector<16x16xf32>, vector<16x16xf32> -> vector<16x16xf32>
    %364 = vector.extract_strided_slice %286 {offsets = [16, 0], sizes = [16, 32], strides = [1, 1]} : vector<32x32xf32> to vector<16x32xf32>
    %cst_102 = arith.constant dense<0.000000e+00> : vector<16x32xf32>
    %365 = tpu.matmul %363, %364, %cst_102 {dimension_numbers = #tpu.dot_dimension_numbers<[1], [0], [0], [1], [0, 0, 1, 1], [], []>} : vector<16x16xf32>, vector<16x32xf32>, vector<16x32xf32> -> vector<16x32xf32>
    %366 = arith.addf %348, %365 : vector<16x32xf32>
    %367 = arith.addf %322, %366 : vector<16x32xf32>
    %368 = vector.broadcast %294 : vector<1x32xf32> to vector<16x32xf32>
    %369 = arith.addf %367, %368 : vector<16x32xf32>
    %cst_103 = arith.constant dense<0.000000e+00> : vector<16xf32>
    %370 = vector.multi_reduction <add>, %369, %cst_103 [1] : vector<16x32xf32> to vector<16xf32>
    %371 = vector.shape_cast %370 : vector<16xf32> to vector<16x1xf32>
    %cst_104 = arith.constant 3.200000e+01 : f32
    %372 = vector.broadcast %cst_104 : f32 to vector<16x1xf32>
    %373 = arith.divf %371, %372 : vector<16x1xf32>
    %374 = vector.broadcast %373 : vector<16x1xf32> to vector<16x32xf32>
    %375 = arith.subf %369, %374 : vector<16x32xf32>
    %376 = arith.mulf %375, %375 : vector<16x32xf32>
    %cst_105 = arith.constant dense<0.000000e+00> : vector<16xf32>
    %377 = vector.multi_reduction <add>, %376, %cst_105 [1] : vector<16x32xf32> to vector<16xf32>
    %378 = vector.shape_cast %377 : vector<16xf32> to vector<16x1xf32>
    %cst_106 = arith.constant 3.200000e+01 : f32
    %379 = vector.broadcast %cst_106 : f32 to vector<16x1xf32>
    %380 = arith.divf %378, %379 : vector<16x1xf32>
    %381 = vector.broadcast %373 : vector<16x1xf32> to vector<16x32xf32>
    %382 = arith.subf %369, %381 : vector<16x32xf32>
    %cst_107 = arith.constant 9.99999993E-9 : f32
    %383 = vector.broadcast %cst_107 : f32 to vector<16x1xf32>
    %384 = arith.addf %380, %383 : vector<16x1xf32>
    %385 = math.rsqrt %384 : vector<16x1xf32>
    %386 = vector.broadcast %385 : vector<16x1xf32> to vector<16x32xf32>
    %387 = arith.mulf %382, %386 : vector<16x32xf32>
    %388 = vector.broadcast %295 : vector<1x32xf32> to vector<16x32xf32>
    %389 = arith.mulf %387, %388 : vector<16x32xf32>
    %390 = vector.broadcast %296 : vector<1x32xf32> to vector<16x32xf32>
    %391 = arith.addf %389, %390 : vector<16x32xf32>
    %cst_108 = arith.constant dense<0.000000e+00> : vector<16x32xf32>
    %392 = tpu.matmul %391, %287, %cst_108 {dimension_numbers = #tpu.dot_dimension_numbers<[1], [0], [0], [1], [0, 0, 1, 1], [], []>} : vector<16x32xf32>, vector<32x32xf32>, vector<16x32xf32> -> vector<16x32xf32>
    %393 = vector.broadcast %297 : vector<1x32xf32> to vector<16x32xf32>
    %394 = arith.addf %392, %393 : vector<16x32xf32>
    %cst_109 = arith.constant 0.000000e+00 : f32
    %395 = vector.broadcast %cst_109 : f32 to vector<16x32xf32>
    %396 = arith.maximumf %394, %395 : vector<16x32xf32>
    %cst_110 = arith.constant dense<0.000000e+00> : vector<16x32xf32>
    %397 = tpu.matmul %396, %288, %cst_110 {dimension_numbers = #tpu.dot_dimension_numbers<[1], [0], [0], [1], [0, 0, 1, 1], [], []>} : vector<16x32xf32>, vector<32x32xf32>, vector<16x32xf32> -> vector<16x32xf32>
    %398 = vector.broadcast %298 : vector<1x32xf32> to vector<16x32xf32>
    %399 = arith.addf %397, %398 : vector<16x32xf32>
    %400 = arith.addf %391, %399 : vector<16x32xf32>
    %cst_111 = arith.constant dense<0.000000e+00> : vector<16xf32>
    %401 = vector.multi_reduction <add>, %400, %cst_111 [1] : vector<16x32xf32> to vector<16xf32>
    %402 = vector.shape_cast %401 : vector<16xf32> to vector<16x1xf32>
    %cst_112 = arith.constant 3.200000e+01 : f32
    %403 = vector.broadcast %cst_112 : f32 to vector<16x1xf32>
    %404 = arith.divf %402, %403 : vector<16x1xf32>
    %405 = vector.broadcast %404 : vector<16x1xf32> to vector<16x32xf32>
    %406 = arith.subf %400, %405 : vector<16x32xf32>
    %407 = arith.mulf %406, %406 : vector<16x32xf32>
    %cst_113 = arith.constant dense<0.000000e+00> : vector<16xf32>
    %408 = vector.multi_reduction <add>, %407, %cst_113 [1] : vector<16x32xf32> to vector<16xf32>
    %409 = vector.shape_cast %408 : vector<16xf32> to vector<16x1xf32>
    %cst_114 = arith.constant 3.200000e+01 : f32
    %410 = vector.broadcast %cst_114 : f32 to vector<16x1xf32>
    %411 = arith.divf %409, %410 : vector<16x1xf32>
    %412 = vector.broadcast %404 : vector<16x1xf32> to vector<16x32xf32>
    %413 = arith.subf %400, %412 : vector<16x32xf32>
    %cst_115 = arith.constant 9.99999974E-6 : f32
    %414 = vector.broadcast %cst_115 : f32 to vector<16x1xf32>
    %415 = arith.addf %411, %414 : vector<16x1xf32>
    %416 = math.rsqrt %415 : vector<16x1xf32>
    %417 = vector.broadcast %416 : vector<16x1xf32> to vector<16x32xf32>
    %418 = arith.mulf %413, %417 : vector<16x32xf32>
    %419 = vector.broadcast %299 : vector<1x32xf32> to vector<16x32xf32>
    %420 = arith.mulf %418, %419 : vector<16x32xf32>
    %421 = vector.broadcast %300 : vector<1x32xf32> to vector<16x32xf32>
    %422 = arith.addf %420, %421 : vector<16x32xf32>
    %423 = vector.extract_strided_slice %422 {offsets = [7, 0], sizes = [1, 32], strides = [1, 1]} : vector<16x32xf32> to vector<1x32xf32>
    %424 = vector.extract_strided_slice %422 {offsets = [15, 0], sizes = [1, 32], strides = [1, 1]} : vector<16x32xf32> to vector<1x32xf32>
    %425 = tpu.concatenate %423, %424 in 0 : vector<1x32xf32>, vector<1x32xf32> -> vector<2x32xf32>
    %cst_116 = arith.constant dense<0.000000e+00> : vector<2xf32>
    %426 = vector.multi_reduction <add>, %425, %cst_116 [1] : vector<2x32xf32> to vector<2xf32>
    %427 = vector.shape_cast %426 : vector<2xf32> to vector<2x1xf32>
    %cst_117 = arith.constant 3.200000e+01 : f32
    %428 = vector.broadcast %cst_117 : f32 to vector<2x1xf32>
    %429 = arith.divf %427, %428 : vector<2x1xf32>
    %430 = vector.broadcast %429 : vector<2x1xf32> to vector<2x32xf32>
    %431 = arith.subf %425, %430 : vector<2x32xf32>
    %432 = arith.mulf %431, %431 : vector<2x32xf32>
    %cst_118 = arith.constant dense<0.000000e+00> : vector<2xf32>
    %433 = vector.multi_reduction <add>, %432, %cst_118 [1] : vector<2x32xf32> to vector<2xf32>
    %434 = vector.shape_cast %433 : vector<2xf32> to vector<2x1xf32>
    %cst_119 = arith.constant 3.200000e+01 : f32
    %435 = vector.broadcast %cst_119 : f32 to vector<2x1xf32>
    %436 = arith.divf %434, %435 : vector<2x1xf32>
    %437 = vector.broadcast %429 : vector<2x1xf32> to vector<2x32xf32>
    %438 = arith.subf %425, %437 : vector<2x32xf32>
    %cst_120 = arith.constant 9.99999993E-9 : f32
    %439 = vector.broadcast %cst_120 : f32 to vector<2x1xf32>
    %440 = arith.addf %436, %439 : vector<2x1xf32>
    %441 = math.rsqrt %440 : vector<2x1xf32>
    %442 = vector.broadcast %441 : vector<2x1xf32> to vector<2x32xf32>
    %443 = arith.mulf %438, %442 : vector<2x32xf32>
    %444 = vector.extract_strided_slice %0 {offsets = [96, 0], sizes = [32, 32], strides = [1, 1]} : vector<128x32xf32> to vector<32x32xf32>
    %cst_121 = arith.constant dense<0.000000e+00> : vector<2x32xf32>
    %445 = tpu.matmul %443, %444, %cst_121 {dimension_numbers = #tpu.dot_dimension_numbers<[1], [0], [0], [1], [0, 0, 1, 1], [], []>} : vector<2x32xf32>, vector<32x32xf32>, vector<2x32xf32> -> vector<2x32xf32>
    %446 = arith.addf %445, %95 : vector<2x32xf32>
    %447 = arith.mulf %446, %104 : vector<2x32xf32>
    %cst_122 = arith.constant dense<0.000000e+00> : vector<2xf32>
    %448 = vector.multi_reduction <add>, %447, %cst_122 [1] : vector<2x32xf32> to vector<2xf32>
    %449 = vector.shape_cast %448 : vector<2xf32> to vector<2x1xf32>
    %c0_123 = arith.constant 0 : index
    %c0_124 = arith.constant 0 : index
    %450 = vector.load %arg6[%c0_123, %c0_124] : memref<2x1xf32, #tpu.memory_space<vmem>>, vector<2x1xf32>
    tpu.vector_store %arg6[%c0_123, %c0_124], %449 {strides = array<i32>} : memref<2x1xf32, #tpu.memory_space<vmem>>, vector<2x1xf32>,
    return
  }
}

</mosaic_0001>

<llo_original>
// kernel: sasrec_forward.1
$region0: #{sasrec_forward.1}
  #allocation0 [shape = 'u32[]', space=smem, size = 0x4, offset = 0x4, fixed_abs, tag = 'smem constant byte address 0x4 - core index']
  #allocation1 [shape = 'u32[72,128]{1,0:T(1,128)}', space=vmem, size = 0x9000, scoped, tag = 'internal scratch']
  %s0 = inlined_call_operand.vmem [shape: s32[16,1], index: 0, kind: input, shape index: {}]
  %s1 = inlined_call_operand.vmem [shape: s32[2,6], index: 1, kind: input, shape index: {}]
  %s2 = inlined_call_operand.vmem [shape: s32[2,1], index: 2, kind: input, shape index: {}]
  %s3 = inlined_call_operand.vmem [shape: f32[128,32], index: 3, kind: input, shape index: {}]
  %s4 = inlined_call_operand.vmem [shape: f32[2,192,32], index: 4, kind: input, shape index: {}]
  %s5 = inlined_call_operand.vmem [shape: f32[2,16,32], index: 5, kind: input, shape index: {}]
  %s6 = inlined_call_operand.vmem [shape: f32[2,1], index: 6, kind: output, shape index: {}]
  %s7 = sld [smem:[#allocation0]]
  $region34: #{sasrec_forward.1} parent=0
    _
  %s9 = ssub.s32 1, %s7
  %s10 = scalar_select 0, %s9, %s7
  // Predicated region
  $region2: #{sasrec_forward.1} parent=0 // pred_check
    _
  $region3: #{sasrec_forward.1} parent=0 // pred_check_branch
    %12 = sbr.rel (0) target = $region5
  $region4: #{sasrec_forward.1} parent=0 // pred_region
    _
  $region5: #{sasrec_forward.1} parent=0 // pred_fallthru
    _
  // Predicated region
  $region6: #{sasrec_forward.1} parent=0 // pred_check
    _
  $region7: #{sasrec_forward.1} parent=0 // pred_check_branch
    %14 = sbr.rel (0) target = $region9
  $region8: #{sasrec_forward.1} parent=0 // pred_region
    _
  $region9: #{sasrec_forward.1} parent=0 // pred_fallthru
    _
  // Predicated region
  $region10: #{sasrec_forward.1} parent=0 // pred_check
    _
  $region11: #{sasrec_forward.1} parent=0 // pred_check_branch
    %16 = sbr.rel (0) target = $region13
  $region12: #{sasrec_forward.1} parent=0 // pred_region
    _
  $region13: #{sasrec_forward.1} parent=0 // pred_fallthru
    _
  // Predicated region
  $region14: #{sasrec_forward.1} parent=0 // pred_check
    _
  $region15: #{sasrec_forward.1} parent=0 // pred_check_branch
    %18 = sbr.rel (0) target = $region17
  $region16: #{sasrec_forward.1} parent=0 // pred_region
    _
  $region17: #{sasrec_forward.1} parent=0 // pred_fallthru
    _
  // Predicated region
  $region18: #{sasrec_forward.1} parent=0 // pred_check
    _
  $region19: #{sasrec_forward.1} parent=0 // pred_check_branch
    %20 = sbr.rel (0) target = $region21
  $region20: #{sasrec_forward.1} parent=0 // pred_region
    _
  $region21: #{sasrec_forward.1} parent=0 // pred_fallthru
    _
  // Predicated region
  $region22: #{sasrec_forward.1} parent=0 // pred_check
    _
  $region23: #{sasrec_forward.1} parent=0 // pred_check_branch
    %22 = sbr.rel (0) target = $region25
  $region24: #{sasrec_forward.1} parent=0 // pred_region
    _
  $region25: #{sasrec_forward.1} parent=0 // pred_fallthru
    _
  %v23 = vld [vmem:[%s3] sm:$0xff]
  %v24 = vld [vmem:[%s3 + $0x8] sm:$0xff]
  %v25 = vld [vmem:[%s3 + $0x10] sm:$0xff]
  %v26 = vld [vmem:[%s3 + $0x18] sm:$0xff]
  %v27 = vld [vmem:[%s3 + $0x20] sm:$0xff]
  %v28 = vld [vmem:[%s3 + $0x28] sm:$0xff]
  %v29 = vld [vmem:[%s3 + $0x30] sm:$0xff]
  %v30 = vld [vmem:[%s3 + $0x38] sm:$0xff]
  %v31 = vld [vmem:[%s3 + $0x40] sm:$0xff]
  %v32 = vld [vmem:[%s3 + $0x48] sm:$0xff]
  %v33 = vld [vmem:[%s3 + $0x50] sm:$0xff]
  %v34 = vld [vmem:[%s3 + $0x58] sm:$0xff]
  %v35 = vld [vmem:[%s3 + $0x60] sm:$0xff]
  %v36 = vld [vmem:[%s3 + $0x68] sm:$0xff]
  %v37 = vld [vmem:[%s3 + $0x70] sm:$0xff]
  %v38 = vld [vmem:[%s3 + $0x78] sm:$0xff]
  %v39 = vld [vmem:[%s0] sm:$0xff]
  %v40 = vld [vmem:[%s0 + $0x8] sm:$0xff]
  %v41 = vlaneseq
  %v42 = vand.u32 %v41, 127
  %v43 = vlaneseq
  %v44 = vshrl.u32 %v43, 7
  %v45 = vadd.s32 %v44, 8
  %vm46 = vcmp.ge.s32.totalorder %v44, 8
  %vm47 = vcmp.ge.s32.totalorder %v45, 8
  %v48 = vsel %vm46, 1, 0
  %v49 = vsel %vm47, 1, 0
  %v50 = vmul.u32 %v48, 8
  %v51 = vmul.u32 %v49, 8
  %v52 = vsub.s32 %v44, %v50
  %v53 = vsub.s32 %v45, %v51
  %vm54 = vcmp.ne.s32.totalorder %v39, 0
  %vm55 = vcmp.ne.s32.totalorder %v40, 0
  %v56 = vadd.s32 %v52, 25
  %v57 = vadd.s32 %v53, 25
  %v58 = vsel %vm54, %v56, 24
  %v59 = vsel %vm55, %v57, 24
  %60 = vset.pattern.permute.xlu0 0
  %61 = vperm.xlu0 %60, %v39
  %v62 = vpop.permute.xlu0 %61
  %63 = vset.pattern.permute.xlu0 0
  %64 = vperm.xlu0 %63, %v40
  %v65 = vpop.permute.xlu0 %64
  %vm66 = vcmp.eq.s32.totalorder %v42, %v62
  %vm67 = vcmp.eq.s32.totalorder %v42, %v65
  %v68 = vsel %vm66, 5.656854, 0.0
  %v69 = vsel %vm67, 5.656854, 0.0
  %70 = vset.pattern.permute.xlu0 0
  %71 = vperm.xlu0 %70, %v58
  %v72 = vpop.permute.xlu0 %71
  %73 = vset.pattern.permute.xlu0 0
  %74 = vperm.xlu0 %73, %v59
  %v75 = vpop.permute.xlu0 %74
  %vm76 = vcmp.eq.s32.totalorder %v42, %v72
  %vm77 = vcmp.eq.s32.totalorder %v42, %v75
  %v78 = vsel %vm76, 1.0, 0.0
  %v79 = vsel %vm77, 1.0, 0.0
  %v80 = vadd.f32 %v68, %v78
  %v81 = vadd.f32 %v69, %v79
  %82 = vmatpush.msra.mxu0 %v38
  %83 = vmatpush.msra.mxu0 %v37
  %84 = vmatpush.msra.mxu0 %v36
  %85 = vmatpush.msra.mxu0 %v35
  %86 = vmatpush.msra.mxu0 %v34
  %87 = vmatpush.msra.mxu0 %v33
  %88 = vmatpush.msra.mxu0 %v32
  %89 = vmatpush.msra.mxu0 %v31
  %90 = vmatpush.msra.mxu0 %v30
  %91 = vmatpush.msra.mxu0 %v29
  %92 = vmatpush.msra.mxu0 %v28
  %93 = vmatpush.msra.mxu0 %v27
  %94 = vmatpush.msra.mxu0 %v26
  %95 = vmatpush.msra.mxu0 %v25
  %96 = vmatpush.msra.mxu0 %v24
  %97 = vmatpush.msra.mxu0 %v23
  %98 = vmatmul.f32.gmra.mxu0 %v80
  %v99 = vpop.f32.mrf.mxu0
  %v100 = vadd.f32 0.0, %v99
  %101 = vmatmul.f32.gmra.mxu0 %v81
  %v102 = vpop.f32.mrf.mxu0
  %v103 = vadd.f32 0.0, %v102
  %104 = vdwg.mxu0
  %v105 = vld [vmem:[%s1] sm:$0x3]
  %vm106 = vcmp.eq.s32.totalorder %v42, 94
  %v107 = vsel %vm106, 1.0, 0.0
  %v108 = vadd.s32 %v105, 40
  %109 = vset.pattern.permute.xlu0 0
  %110 = vperm.xlu0 %109, %v108
  %v111 = vpop.permute.xlu0 %110
  %vm112 = vcmp.eq.s32.totalorder %v42, %v111
  %v113 = vsel %vm112, 1.0, 0.0
  %v114 = vadd.f32 %v107, %v113
  %v115 = vadd.s32 %v105, 51
  %116 = vset.pattern.permute.xlu0 1
  %117 = vperm.xlu0 %116, %v115
  %v118 = vpop.permute.xlu0 %117
  %vm119 = vcmp.eq.s32.totalorder %v42, %v118
  %v120 = vsel %vm119, 1.0, 0.0
  %v121 = vadd.f32 %v114, %v120
  %v122 = vadd.s32 %v105, 57
  %123 = vset.pattern.permute.xlu0 2
  %124 = vperm.xlu0 %123, %v122
  %v125 = vpop.permute.xlu0 %124
  %vm126 = vcmp.eq.s32.totalorder %v42, %v125
  %v127 = vsel %vm126, 1.0, 0.0
  %v128 = vadd.f32 %v121, %v127
  %v129 = vadd.s32 %v105, 81
  %130 = vset.pattern.permute.xlu0 3
  %131 = vperm.xlu0 %130, %v129
  %v132 = vpop.permute.xlu0 %131
  %vm133 = vcmp.eq.s32.totalorder %v42, %v132
  %v134 = vsel %vm133, 1.0, 0.0
  %v135 = vadd.f32 %v128, %v134
  %v136 = vadd.s32 %v105, 88
  %137 = vset.pattern.permute.xlu0 4
  %138 = vperm.xlu0 %137, %v136
  %v139 = vpop.permute.xlu0 %138
  %vm140 = vcmp.eq.s32.totalorder %v42, %v139
  %v141 = vsel %vm140, 1.0, 0.0
  %v142 = vadd.f32 %v135, %v141
  %v143 = vadd.s32 %v105, 92
  %144 = vset.pattern.permute.xlu0 5
  %145 = vperm.xlu0 %144, %v143
  %v146 = vpop.permute.xlu0 %145
  %vm147 = vcmp.eq.s32.totalorder %v42, %v146
  %v148 = vsel %vm147, 1.0, 0.0
  %v149 = vadd.f32 %v142, %v148
  %150 = vmatpush.msra.mxu0 %v38
  %151 = vmatpush.msra.mxu0 %v37
  %152 = vmatpush.msra.mxu0 %v36
  %153 = vmatpush.msra.mxu0 %v35
  %154 = vmatpush.msra.mxu0 %v34
  %155 = vmatpush.msra.mxu0 %v33
  %156 = vmatpush.msra.mxu0 %v32
  %157 = vmatpush.msra.mxu0 %v31
  %158 = vmatpush.msra.mxu0 %v30
  %159 = vmatpush.msra.mxu0 %v29
  %160 = vmatpush.msra.mxu0 %v28
  %161 = vmatpush.msra.mxu0 %v27
  %162 = vmatpush.msra.mxu0 %v26
  %163 = vmatpush.msra.mxu0 %v25
  %164 = vmatpush.msra.mxu0 %v24
  %165 = vmatpush.msra.mxu0 %v23
  %166 = vmatmul.f32.gmra.mxu0 %v149
  %v167 = vpop.f32.mrf.mxu0
  %v168 = vadd.f32 0.0, %v167
  %169 = vdwg.mxu0
  %v170 = vld [vmem:[%s2] sm:$0x3]
  %171 = vset.pattern.permute.xlu0 0
  %172 = vperm.xlu0 %171, %v170
  %v173 = vpop.permute.xlu0 %172
  %vm174 = vcmp.eq.s32.totalorder %v42, %v173
  %v175 = vsel %vm174, 1.0, 0.0
  %176 = vmatpush.msra.mxu0 %v38
  %177 = vmatpush.msra.mxu0 %v37
  %178 = vmatpush.msra.mxu0 %v36
  %179 = vmatpush.msra.mxu0 %v35
  %180 = vmatpush.msra.mxu0 %v34
  %181 = vmatpush.msra.mxu0 %v33
  %182 = vmatpush.msra.mxu0 %v32
  %183 = vmatpush.msra.mxu0 %v31
  %184 = vmatpush.msra.mxu0 %v30
  %185 = vmatpush.msra.mxu0 %v29
  %186 = vmatpush.msra.mxu0 %v28
  %187 = vmatpush.msra.mxu0 %v27
  %188 = vmatpush.msra.mxu0 %v26
  %189 = vmatpush.msra.mxu0 %v25
  %190 = vmatpush.msra.mxu0 %v24
  %191 = vmatpush.msra.mxu0 %v23
  %192 = vmatmul.f32.gmra.mxu0 %v175
  %v193 = vpop.f32.mrf.mxu0
  %v194 = vadd.f32 0.0, %v193
  %195 = vdwg.mxu0
  %vm196 = vcmp.ge.s32.totalorder %v44, 0
  %vm197 = vcmp.ge.s32.totalorder %v45, 0
  %vm198 = vcmp.lt.s32.totalorder %v44, 8
  %vm199 = vcmp.lt.s32.totalorder %v45, 8
  %vm200 = vmand %vm196, %vm198
  %vm201 = vmand %vm197, %vm199
  %vm202 = vcmp.ge.s32.totalorder %v42, 0
  %vm203 = vcmp.lt.s32.totalorder %v42, 8
  %vm204 = vmand %vm202, %vm203
  %vm205 = vmand %vm200, %vm204
  %vm206 = vmand %vm201, %vm204
  %vm207 = vcmp.lt.s32.totalorder %v44, 16
  %vm208 = vcmp.lt.s32.totalorder %v45, 16
  %vm209 = vmand %vm46, %vm207
  %vm210 = vmand %vm47, %vm208
  %vm211 = vcmp.ge.s32.totalorder %v42, 8
  %vm212 = vcmp.lt.s32.totalorder %v42, 16
  %vm213 = vmand %vm211, %vm212
  %vm214 = vmand %vm209, %vm213
  %vm215 = vmand %vm210, %vm213
  %vm216 = vmor %vm205, %vm214
  %vm217 = vmor %vm206, %vm215
  %vm218 = vcmp.le.s32.totalorder %v42, %v44
  %vm219 = vcmp.le.s32.totalorder %v42, %v45
  %vm220 = vmand %vm216, %vm218
  %vm221 = vmand %vm217, %vm219
  %v222 = vsel %vm220, 0.0, -1e+30
  %v223 = vsel %vm221, 0.0, -1e+30
  %v224 = vld [vmem:[%s4] sm:$0xff]
  %v225 = vld [vmem:[%s4 + $0x8] sm:$0xff]
  %v226 = vld [vmem:[%s4 + $0x10] sm:$0xff]
  %v227 = vld [vmem:[%s4 + $0x18] sm:$0xff]
  %v228 = vld [vmem:[%s4 + $0x20] sm:$0xff]
  %v229 = vld [vmem:[%s4 + $0x28] sm:$0xff]
  %v230 = vld [vmem:[%s4 + $0x30] sm:$0xff]
  %v231 = vld [vmem:[%s4 + $0x38] sm:$0xff]
  %v232 = vld [vmem:[%s4 + $0x40] sm:$0xff]
  %v233 = vld [vmem:[%s4 + $0x48] sm:$0xff]
  %v234 = vld [vmem:[%s4 + $0x50] sm:$0xff]
  %v235 = vld [vmem:[%s4 + $0x58] sm:$0xff]
  %v236 = vld [vmem:[%s4 + $0x60] sm:$0xff]
  %v237 = vld [vmem:[%s4 + $0x68] sm:$0xff]
  %v238 = vld [vmem:[%s4 + $0x70] sm:$0xff]
  %v239 = vld [vmem:[%s4 + $0x78] sm:$0xff]
  %v240 = vld [vmem:[%s4 + $0x80] sm:$0xff]
  %v241 = vld [vmem:[%s4 + $0x88] sm:$0xff]
  %v242 = vld [vmem:[%s4 + $0x90] sm:$0xff]
  %v243 = vld [vmem:[%s4 + $0x98] sm:$0xff]
  %v244 = vld [vmem:[%s4 + $0xa0] sm:$0xff]
  %v245 = vld [vmem:[%s4 + $0xa8] sm:$0xff]
  %v246 = vld [vmem:[%s4 + $0xb0] sm:$0xff]
  %v247 = vld [vmem:[%s4 + $0xb8] sm:$0xff]
  %v248 = vld [vmem:[%s5] sm:$0xff]
  %v249 = vld [vmem:[%s5 + $0x8] sm:$0xff]
  %vm250 = vcmask 261120
  %v251 = vsel %vm250, %v100, 0.0
  %252 = vadd.xlane.f32.xlu0 %v251
  %v253 = vpop.xlane.xlu0 %252
  %v254 = vsel %vm250, %v103, 0.0
  %255 = vadd.xlane.f32.xlu0 %v254
  %v256 = vpop.xlane.xlu0 %255
  %v257 = vrcp.pop 32.0
  %v258 = vmul.f32 32.0, %v257
  %v259 = vsub.f32 1.0, %v258
  %v260 = vmul.f32 %v257, %v259
  %v261 = vadd.f32 %v257, %v260
  %vm262 = vweird.f32 %v257
  %v263 = vsel %vm262, %v257, %v261
  %v264 = vmul.f32 %v253, %v263
  %v265 = vmul.f32 %v256, %v263
  %v266 = vsub.f32 %v100, %v264
  %v267 = vsub.f32 %v103, %v265
  %v268 = vmul.f32 %v266, %v266
  %v269 = vmul.f32 %v267, %v267
  %v270 = vsel %vm250, %v268, 0.0
  %271 = vadd.xlane.f32.xlu0 %v270
  %v272 = vpop.xlane.xlu0 %271
  %v273 = vsel %vm250, %v269, 0.0
  %274 = vadd.xlane.f32.xlu0 %v273
  %v275 = vpop.xlane.xlu0 %274
  %v276 = vmul.f32 %v272, %v263
  %v277 = vmul.f32 %v275, %v263
  %v278 = vadd.f32 %v276, 1e-08
  %v279 = vadd.f32 %v277, 1e-08
  %v280 = vrsqrt.pop %v278
  %v281 = vmul.f32 %v280, %v278
  %v282 = vmul.f32 %v281, %v280
  %v283 = vmul.f32 0.5, %v282
  %v284 = vsub.f32 1.5, %v283
  %v285 = vmul.f32 %v280, %v284
  %vm286 = vweird.f32 %v278
  %vm287 = vweird.f32 %v280
  %vm288 = vmor %vm286, %vm287
  %v289 = vsel %vm288, %v280, %v285
  %v290 = vrsqrt.pop %v279
  %v291 = vmul.f32 %v290, %v279
  %v292 = vmul.f32 %v291, %v290
  %v293 = vmul.f32 0.5, %v292
  %v294 = vsub.f32 1.5, %v293
  %v295 = vmul.f32 %v290, %v294
  %vm296 = vweird.f32 %v279
  %vm297 = vweird.f32 %v290
  %vm298 = vmor %vm296, %vm297
  %v299 = vsel %vm298, %v290, %v295
  %v300 = vmul.f32 %v266, %v289
  %v301 = vmul.f32 %v267, %v299
  %v302 = vperm.slane %v248, 0
  %v303 = vmul.f32 %v300, %v302
  %v304 = vmul.f32 %v301, %v302
  %v305 = vperm.slane %v248, 1
  %v306 = vadd.f32 %v303, %v305
  %v307 = vadd.f32 %v304, %v305
  %v308 = vperm.slane %v248, 2
  %v310 = vsel %vm250, %v306, 0
  %v313 = vsel %vm250, %v307, 0
  %315 = vmatpush.msra.mxu0 0.0
  %316 = vmatpush.msra.mxu0 0.0
  %317 = vmatpush.msra.mxu0 0.0
  %318 = vmatpush.msra.mxu0 0.0
  %319 = vmatpush.msra.mxu0 0.0
  %320 = vmatpush.msra.mxu0 0.0
  %321 = vmatpush.msra.mxu0 0.0
  %322 = vmatpush.msra.mxu0 0.0
  %323 = vmatpush.msra.mxu0 0.0
  %324 = vmatpush.msra.mxu0 0.0
  %325 = vmatpush.msra.mxu0 0.0
  %326 = vmatpush.msra.mxu0 0.0
  %327 = vmatpush.msra.mxu0 %v227
  %328 = vmatpush.msra.mxu0 %v226
  %329 = vmatpush.msra.mxu0 %v225
  %330 = vmatpush.msra.mxu0 %v224
  %331 = vmatmul.f32.gmra.mxu0 %v310
  %v332 = vpop.f32.mrf.mxu0
  %v333 = vadd.f32 %v308, %v332
  %334 = vmatmul.f32.gmra.mxu0 %v313
  %v335 = vpop.f32.mrf.mxu0
  %v336 = vadd.f32 %v308, %v335
  %337 = vdwg.mxu0
  %v338 = vperm.slane %v248, 3
  %v340 = vsel %vm250, %v100, 0
  %v343 = vsel %vm250, %v103, 0
  %345 = vmatpush.msra.mxu0 0.0
  %346 = vmatpush.msra.mxu0 0.0
  %347 = vmatpush.msra.mxu0 0.0
  %348 = vmatpush.msra.mxu0 0.0
  %349 = vmatpush.msra.mxu0 0.0
  %350 = vmatpush.msra.mxu0 0.0
  %351 = vmatpush.msra.mxu0 0.0
  %352 = vmatpush.msra.mxu0 0.0
  %353 = vmatpush.msra.mxu0 0.0
  %354 = vmatpush.msra.mxu0 0.0
  %355 = vmatpush.msra.mxu0 0.0
  %356 = vmatpush.msra.mxu0 0.0
  %357 = vmatpush.msra.mxu0 %v231
  %358 = vmatpush.msra.mxu0 %v230
  %359 = vmatpush.msra.mxu0 %v229
  %360 = vmatpush.msra.mxu0 %v228
  %361 = vmatmul.f32.gmra.mxu0 %v340
  %v362 = vpop.f32.mrf.mxu0
  %v363 = vadd.f32 %v338, %v362
  %364 = vmatmul.f32.gmra.mxu0 %v343
  %v365 = vpop.f32.mrf.mxu0
  %v366 = vadd.f32 %v338, %v365
  %367 = vdwg.mxu0
  %v368 = vperm.slane %v248, 4
  %369 = vmatpush.msra.mxu0 0.0
  %370 = vmatpush.msra.mxu0 0.0
  %371 = vmatpush.msra.mxu0 0.0
  %372 = vmatpush.msra.mxu0 0.0
  %373 = vmatpush.msra.mxu0 0.0
  %374 = vmatpush.msra.mxu0 0.0
  %375 = vmatpush.msra.mxu0 0.0
  %376 = vmatpush.msra.mxu0 0.0
  %377 = vmatpush.msra.mxu0 0.0
  %378 = vmatpush.msra.mxu0 0.0
  %379 = vmatpush.msra.mxu0 0.0
  %380 = vmatpush.msra.mxu0 0.0
  %381 = vmatpush.msra.mxu0 %v235
  %382 = vmatpush.msra.mxu0 %v234
  %383 = vmatpush.msra.mxu0 %v233
  %384 = vmatpush.msra.mxu0 %v232
  %385 = vmatmul.f32.gmra.mxu0 %v340
  %v386 = vpop.f32.mrf.mxu0
  %v387 = vadd.f32 %v368, %v386
  %388 = vmatmul.f32.gmra.mxu0 %v343
  %v389 = vpop.f32.mrf.mxu0
  %v390 = vadd.f32 %v368, %v389
  %391 = vdwg.mxu0
  %vm392 = vcmask 130048
  %v394 = vsel %vm392, %v333, 0
  %v397 = vsel %vm392, %v336, 0
  %v400 = vsel %vm392, %v363, 0
  %v403 = vsel %vm392, %v366, 0
  %405 = vmatpush.xpose.msra.mxu0 0.0
  %406 = vmatpush.xpose.msra.mxu0 0.0
  %407 = vmatpush.xpose.msra.mxu0 0.0
  %408 = vmatpush.xpose.msra.mxu0 0.0
  %409 = vmatpush.xpose.msra.mxu0 0.0
  %410 = vmatpush.xpose.msra.mxu0 0.0
  %411 = vmatpush.xpose.msra.mxu0 0.0
  %412 = vmatpush.xpose.msra.mxu0 0.0
  %413 = vmatpush.xpose.msra.mxu0 0.0
  %414 = vmatpush.xpose.msra.mxu0 0.0
  %415 = vmatpush.xpose.msra.mxu0 0.0
  %416 = vmatpush.xpose.msra.mxu0 0.0
  %417 = vmatpush.xpose.msra.mxu0 0.0
  %418 = vmatpush.xpose.msra.mxu0 0.0
  %419 = vmatpush.xpose.msra.mxu0 %v403
  %420 = vmatpush.xpose.msra.mxu0 %v400
  %421 = vmatmul.f32.gmra.mxu0 %v394
  %v422 = vpop.f32.mrf.mxu0
  %v423 = vadd.f32 %v222, %v422
  %424 = vmatmul.f32.gmra.mxu0 %v397
  %v425 = vpop.f32.mrf.mxu0
  %v426 = vadd.f32 %v223, %v425
  %427 = vdwg.mxu0
  %v428 = vsel %vm392, %v423, -inf
  %429 = vmax.xlane.f32.xlu0 %v428
  %v430 = vpop.xlane.xlu0 %429
  %v431 = vsel %vm392, %v426, -inf
  %432 = vmax.xlane.f32.xlu0 %v431
  %v433 = vpop.xlane.xlu0 %432
  %v434 = vsub.f32 %v423, %v430
  %v435 = vsub.f32 %v426, %v433
  %v436 = vmul.f32 %v434, 1.442695
  %v437 = vpow.pop %v436
  %v438 = vmul.f32 %v435, 1.442695
  %v439 = vpow.pop %v438
  %v440 = vsel %vm392, %v437, 0.0
  %441 = vadd.xlane.f32.xlu0 %v440
  %v442 = vpop.xlane.xlu0 %441
  %v443 = vsel %vm392, %v439, 0.0
  %444 = vadd.xlane.f32.xlu0 %v443
  %v445 = vpop.xlane.xlu0 %444
  %v446 = vrcp.pop %v442
  %v447 = vmul.f32 %v442, %v446
  %v448 = vsub.f32 1.0, %v447
  %v449 = vmul.f32 %v446, %v448
  %v450 = vadd.f32 %v446, %v449
  %vm451 = vweird.f32 %v442
  %vm452 = vweird.f32 %v446
  %vm453 = vmor %vm451, %vm452
  %v454 = vsel %vm453, %v446, %v450
  %v455 = vand.u32 2147483647, %v442
  %vm456 = vcmp.eq.f32.partialorder %v455, 8.507059e+37
  %v457 = vand.u32 %v442, 2147483648
  %v458 = vor.u32 1.1754944e-38, %v457
  %v459 = vsel %vm456, %v458, %v454
  %v460 = vmul.f32 %v437, %v459
  %v461 = vrcp.pop %v445
  %v462 = vmul.f32 %v445, %v461
  %v463 = vsub.f32 1.0, %v462
  %v464 = vmul.f32 %v461, %v463
  %v465 = vadd.f32 %v461, %v464
  %vm466 = vweird.f32 %v445
  %vm467 = vweird.f32 %v461
  %vm468 = vmor %vm466, %vm467
  %v469 = vsel %vm468, %v461, %v465
  %v470 = vand.u32 2147483647, %v445
  %vm471 = vcmp.eq.f32.partialorder %v470, 8.507059e+37
  %v472 = vand.u32 %v445, 2147483648
  %v473 = vor.u32 1.1754944e-38, %v472
  %v474 = vsel %vm471, %v473, %v469
  %v475 = vmul.f32 %v439, %v474
  %v477 = vsel %vm392, %v460, 0
  %v480 = vsel %vm392, %v475, 0
  %482 = vmatpush.msra.mxu0 0.0
  %483 = vmatpush.msra.mxu0 0.0
  %484 = vmatpush.msra.mxu0 0.0
  %485 = vmatpush.msra.mxu0 0.0
  %486 = vmatpush.msra.mxu0 0.0
  %487 = vmatpush.msra.mxu0 0.0
  %488 = vmatpush.msra.mxu0 0.0
  %489 = vmatpush.msra.mxu0 0.0
  %490 = vmatpush.msra.mxu0 0.0
  %491 = vmatpush.msra.mxu0 0.0
  %492 = vmatpush.msra.mxu0 0.0
  %493 = vmatpush.msra.mxu0 0.0
  %494 = vmatpush.msra.mxu0 0.0
  %495 = vmatpush.msra.mxu0 0.0
  %496 = vmatpush.msra.mxu0 %v390
  %497 = vmatpush.msra.mxu0 %v387
  %498 = vmatmul.f32.gmra.mxu0 %v477
  %v499 = vpop.f32.mrf.mxu0
  %v500 = vadd.f32 0.0, %v499
  %501 = vmatmul.f32.gmra.mxu0 %v480
  %v502 = vpop.f32.mrf.mxu0
  %v503 = vadd.f32 0.0, %v502
  %504 = vdwg.mxu0
  %505 = vrot.lane.b32.xlu0 %v333, 112
  %v506 = vpop.permute.xlu0 %505
  %507 = vrot.lane.b32.xlu0 %v336, 112
  %v508 = vpop.permute.xlu0 %507
  %509 = vrot.lane.b32.xlu0 %v363, 112
  %v510 = vpop.permute.xlu0 %509
  %511 = vrot.lane.b32.xlu0 %v366, 112
  %v512 = vpop.permute.xlu0 %511
  %v513 = vsel %vm392, %v506, 0
  %v515 = vsel %vm392, %v508, 0
  %v517 = vsel %vm392, %v510, 0
  %v519 = vsel %vm392, %v512, 0
  %521 = vmatpush.xpose.msra.mxu0 0.0
  %522 = vmatpush.xpose.msra.mxu0 0.0
  %523 = vmatpush.xpose.msra.mxu0 0.0
  %524 = vmatpush.xpose.msra.mxu0 0.0
  %525 = vmatpush.xpose.msra.mxu0 0.0
  %526 = vmatpush.xpose.msra.mxu0 0.0
  %527 = vmatpush.xpose.msra.mxu0 0.0
  %528 = vmatpush.xpose.msra.mxu0 0.0
  %529 = vmatpush.xpose.msra.mxu0 0.0
  %530 = vmatpush.xpose.msra.mxu0 0.0
  %531 = vmatpush.xpose.msra.mxu0 0.0
  %532 = vmatpush.xpose.msra.mxu0 0.0
  %533 = vmatpush.xpose.msra.mxu0 0.0
  %534 = vmatpush.xpose.msra.mxu0 0.0
  %535 = vmatpush.xpose.msra.mxu0 %v519
  %536 = vmatpush.xpose.msra.mxu0 %v517
  %537 = vmatmul.f32.gmra.mxu0 %v513
  %v538 = vpop.f32.mrf.mxu0
  %v539 = vadd.f32 %v222, %v538
  %540 = vmatmul.f32.gmra.mxu0 %v515
  %v541 = vpop.f32.mrf.mxu0
  %v542 = vadd.f32 %v223, %v541
  %543 = vdwg.mxu0
  %v544 = vsel %vm392, %v539, -inf
  %545 = vmax.xlane.f32.xlu0 %v544
  %v546 = vpop.xlane.xlu0 %545
  %v547 = vsel %vm392, %v542, -inf
  %548 = vmax.xlane.f32.xlu0 %v547
  %v549 = vpop.xlane.xlu0 %548
  %v550 = vsub.f32 %v539, %v546
  %v551 = vsub.f32 %v542, %v549
  %v552 = vmul.f32 %v550, 1.442695
  %v553 = vpow.pop %v552
  %v554 = vmul.f32 %v551, 1.442695
  %v555 = vpow.pop %v554
  %v556 = vsel %vm392, %v553, 0.0
  %557 = vadd.xlane.f32.xlu0 %v556
  %v558 = vpop.xlane.xlu0 %557
  %v559 = vsel %vm392, %v555, 0.0
  %560 = vadd.xlane.f32.xlu0 %v559
  %v561 = vpop.xlane.xlu0 %560
  %v562 = vrcp.pop %v558
  %v563 = vmul.f32 %v558, %v562
  %v564 = vsub.f32 1.0, %v563
  %v565 = vmul.f32 %v562, %v564
  %v566 = vadd.f32 %v562, %v565
  %vm567 = vweird.f32 %v558
  %vm568 = vweird.f32 %v562
  %vm569 = vmor %vm567, %vm568
  %v570 = vsel %vm569, %v562, %v566
  %v571 = vand.u32 2147483647, %v558
  %vm572 = vcmp.eq.f32.partialorder %v571, 8.507059e+37
  %v573 = vand.u32 %v558, 2147483648
  %v574 = vor.u32 1.1754944e-38, %v573
  %v575 = vsel %vm572, %v574, %v570
  %v576 = vmul.f32 %v553, %v575
  %v577 = vrcp.pop %v561
  %v578 = vmul.f32 %v561, %v577
  %v579 = vsub.f32 1.0, %v578
  %v580 = vmul.f32 %v577, %v579
  %v581 = vadd.f32 %v577, %v580
  %vm582 = vweird.f32 %v561
  %vm583 = vweird.f32 %v577
  %vm584 = vmor %vm582, %vm583
  %v585 = vsel %vm584, %v577, %v581
  %v586 = vand.u32 2147483647, %v561
  %vm587 = vcmp.eq.f32.partialorder %v586, 8.507059e+37
  %v588 = vand.u32 %v561, 2147483648
  %v589 = vor.u32 1.1754944e-38, %v588
  %v590 = vsel %vm587, %v589, %v585
  %v591 = vmul.f32 %v555, %v590
  %594 = vrot.lane.b32.xlu0 %v387, 112
  %v595 = vpop.permute.xlu0 %594
  %596 = vrot.lane.b32.xlu0 %v390, 112
  %v597 = vpop.permute.xlu0 %596
  %v601 = vsel %vm392, %v576, 0
  %v604 = vsel %vm392, %v591, 0
  %606 = vmatpush.msra.mxu0 0.0
  %607 = vmatpush.msra.mxu0 0.0
  %608 = vmatpush.msra.mxu0 0.0
  %609 = vmatpush.msra.mxu0 0.0
  %610 = vmatpush.msra.mxu0 0.0
  %611 = vmatpush.msra.mxu0 0.0
  %612 = vmatpush.msra.mxu0 0.0
  %613 = vmatpush.msra.mxu0 0.0
  %614 = vmatpush.msra.mxu0 0.0
  %615 = vmatpush.msra.mxu0 0.0
  %616 = vmatpush.msra.mxu0 0.0
  %617 = vmatpush.msra.mxu0 0.0
  %618 = vmatpush.msra.mxu0 0.0
  %619 = vmatpush.msra.mxu0 0.0
  %620 = vmatpush.msra.mxu0 %v597
  %621 = vmatpush.msra.mxu0 %v595
  %622 = vmatmul.f32.gmra.mxu0 %v601
  %v623 = vpop.f32.mrf.mxu0
  %v624 = vadd.f32 0.0, %v623
  %625 = vmatmul.f32.gmra.mxu0 %v604
  %v626 = vpop.f32.mrf.mxu0
  %v627 = vadd.f32 0.0, %v626
  %628 = vdwg.mxu0
  %v630 = vsel %vm392, %v624, 0
  %v633 = vsel %vm392, %v627, 0
  %635 = vmatpush.msra.mxu0 0.0
  %636 = vmatpush.msra.mxu0 0.0
  %637 = vmatpush.msra.mxu0 0.0
  %638 = vmatpush.msra.mxu0 0.0
  %639 = vmatpush.msra.mxu0 0.0
  %640 = vmatpush.msra.mxu0 0.0
  %641 = vmatpush.msra.mxu0 0.0
  %642 = vmatpush.msra.mxu0 0.0
  %643 = vmatpush.msra.mxu0 0.0
  %644 = vmatpush.msra.mxu0 0.0
  %645 = vmatpush.msra.mxu0 0.0
  %646 = vmatpush.msra.mxu0 0.0
  %647 = vmatpush.msra.mxu0 0.0
  %648 = vmatpush.msra.mxu0 0.0
  %649 = vmatpush.msra.mxu0 %v239
  %650 = vmatpush.msra.mxu0 %v238
  %651 = vmatmul.f32.gmra.mxu0 %v630
  %v652 = vpop.f32.mrf.mxu0
  %v653 = vadd.f32 0.0, %v652
  %654 = vmatmul.f32.gmra.mxu0 %v633
  %v655 = vpop.f32.mrf.mxu0
  %v656 = vadd.f32 0.0, %v655
  %657 = vdwg.mxu0
  %v659 = vsel %vm392, %v500, 0
  %v662 = vsel %vm392, %v503, 0
  %664 = vmatpush.msra.mxu0 0.0
  %665 = vmatpush.msra.mxu0 0.0
  %666 = vmatpush.msra.mxu0 0.0
  %667 = vmatpush.msra.mxu0 0.0
  %668 = vmatpush.msra.mxu0 0.0
  %669 = vmatpush.msra.mxu0 0.0
  %670 = vmatpush.msra.mxu0 0.0
  %671 = vmatpush.msra.mxu0 0.0
  %672 = vmatpush.msra.mxu0 0.0
  %673 = vmatpush.msra.mxu0 0.0
  %674 = vmatpush.msra.mxu0 0.0
  %675 = vmatpush.msra.mxu0 0.0
  %676 = vmatpush.msra.mxu0 0.0
  %677 = vmatpush.msra.mxu0 0.0
  %678 = vmatpush.msra.mxu0 %v237
  %679 = vmatpush.msra.mxu0 %v236
  %680 = vmatmul.f32.gmra.mxu0 %v659
  %v681 = vpop.f32.mrf.mxu0
  %v682 = vadd.f32 %v653, %v681
  %683 = vmatmul.f32.gmra.mxu0 %v662
  %v684 = vpop.f32.mrf.mxu0
  %v685 = vadd.f32 %v656, %v684
  %686 = vdwg.mxu0
  %v687 = vadd.f32 %v306, %v682
  %v688 = vadd.f32 %v307, %v685
  %v689 = vperm.slane %v248, 5
  %v690 = vadd.f32 %v687, %v689
  %v691 = vadd.f32 %v688, %v689
  %v692 = vsel %vm250, %v690, 0.0
  %693 = vadd.xlane.f32.xlu0 %v692
  %v694 = vpop.xlane.xlu0 %693
  %v695 = vsel %vm250, %v691, 0.0
  %696 = vadd.xlane.f32.xlu0 %v695
  %v697 = vpop.xlane.xlu0 %696
  %v698 = vmul.f32 %v694, %v263
  %v699 = vmul.f32 %v697, %v263
  %v700 = vsub.f32 %v690, %v698
  %v701 = vsub.f32 %v691, %v699
  %v702 = vmul.f32 %v700, %v700
  %v703 = vmul.f32 %v701, %v701
  %v704 = vsel %vm250, %v702, 0.0
  %705 = vadd.xlane.f32.xlu0 %v704
  %v706 = vpop.xlane.xlu0 %705
  %v707 = vsel %vm250, %v703, 0.0
  %708 = vadd.xlane.f32.xlu0 %v707
  %v709 = vpop.xlane.xlu0 %708
  %v710 = vmul.f32 %v706, %v263
  %v711 = vmul.f32 %v709, %v263
  %v712 = vadd.f32 %v710, 1e-08
  %v713 = vadd.f32 %v711, 1e-08
  %v714 = vrsqrt.pop %v712
  %v715 = vmul.f32 %v714, %v712
  %v716 = vmul.f32 %v715, %v714
  %v717 = vmul.f32 0.5, %v716
  %v718 = vsub.f32 1.5, %v717
  %v719 = vmul.f32 %v714, %v718
  %vm720 = vweird.f32 %v712
  %vm721 = vweird.f32 %v714
  %vm722 = vmor %vm720, %vm721
  %v723 = vsel %vm722, %v714, %v719
  %v724 = vrsqrt.pop %v713
  %v725 = vmul.f32 %v724, %v713
  %v726 = vmul.f32 %v725, %v724
  %v727 = vmul.f32 0.5, %v726
  %v728 = vsub.f32 1.5, %v727
  %v729 = vmul.f32 %v724, %v728
  %vm730 = vweird.f32 %v713
  %vm731 = vweird.f32 %v724
  %vm732 = vmor %vm730, %vm731
  %v733 = vsel %vm732, %v724, %v729
  %v734 = vmul.f32 %v700, %v723
  %v735 = vmul.f32 %v701, %v733
  %v736 = vperm.slane %v248, 6
  %v737 = vmul.f32 %v734, %v736
  %v738 = vmul.f32 %v735, %v736
  %v739 = vperm.slane %v248, 7
  %v740 = vadd.f32 %v737, %v739
  %v741 = vadd.f32 %v738, %v739
  %v742 = vperm.slane %v249, 0
  %v744 = vsel %vm250, %v740, 0
  %v747 = vsel %vm250, %v741, 0
  %749 = vmatpush.msra.mxu0 0.0
  %750 = vmatpush.msra.mxu0 0.0
  %751 = vmatpush.msra.mxu0 0.0
  %752 = vmatpush.msra.mxu0 0.0
  %753 = vmatpush.msra.mxu0 0.0
  %754 = vmatpush.msra.mxu0 0.0
  %755 = vmatpush.msra.mxu0 0.0
  %756 = vmatpush.msra.mxu0 0.0
  %757 = vmatpush.msra.mxu0 0.0
  %758 = vmatpush.msra.mxu0 0.0
  %759 = vmatpush.msra.mxu0 0.0
  %760 = vmatpush.msra.mxu0 0.0
  %761 = vmatpush.msra.mxu0 %v243
  %762 = vmatpush.msra.mxu0 %v242
  %763 = vmatpush.msra.mxu0 %v241
  %764 = vmatpush.msra.mxu0 %v240
  %765 = vmatmul.f32.gmra.mxu0 %v744
  %v766 = vpop.f32.mrf.mxu0
  %v767 = vadd.f32 %v742, %v766
  %768 = vmatmul.f32.gmra.mxu0 %v747
  %v769 = vpop.f32.mrf.mxu0
  %v770 = vadd.f32 %v742, %v769
  %771 = vdwg.mxu0
  %v772 = vmax.f32 %v767, 0.0
  %v773 = vmax.f32 %v770, 0.0
  %v774 = vperm.slane %v249, 1
  %v776 = vsel %vm250, %v772, 0
  %v779 = vsel %vm250, %v773, 0
  %781 = vmatpush.msra.mxu0 0.0
  %782 = vmatpush.msra.mxu0 0.0
  %783 = vmatpush.msra.mxu0 0.0
  %784 = vmatpush.msra.mxu0 0.0
  %785 = vmatpush.msra.mxu0 0.0
  %786 = vmatpush.msra.mxu0 0.0
  %787 = vmatpush.msra.mxu0 0.0
  %788 = vmatpush.msra.mxu0 0.0
  %789 = vmatpush.msra.mxu0 0.0
  %790 = vmatpush.msra.mxu0 0.0
  %791 = vmatpush.msra.mxu0 0.0
  %792 = vmatpush.msra.mxu0 0.0
  %793 = vmatpush.msra.mxu0 %v247
  %794 = vmatpush.msra.mxu0 %v246
  %795 = vmatpush.msra.mxu0 %v245
  %796 = vmatpush.msra.mxu0 %v244
  %797 = vmatmul.f32.gmra.mxu0 %v776
  %v798 = vpop.f32.mrf.mxu0
  %v799 = vadd.f32 %v774, %v798
  %800 = vmatmul.f32.gmra.mxu0 %v779
  %v801 = vpop.f32.mrf.mxu0
  %v802 = vadd.f32 %v774, %v801
  %803 = vdwg.mxu0
  %v804 = vadd.f32 %v740, %v799
  %v805 = vadd.f32 %v741, %v802
  %v806 = vsel %vm250, %v804, 0.0
  %807 = vadd.xlane.f32.xlu0 %v806
  %v808 = vpop.xlane.xlu0 %807
  %v809 = vsel %vm250, %v805, 0.0
  %810 = vadd.xlane.f32.xlu0 %v809
  %v811 = vpop.xlane.xlu0 %810
  %v812 = vmul.f32 %v808, %v263
  %v813 = vmul.f32 %v811, %v263
  %v814 = vsub.f32 %v804, %v812
  %v815 = vsub.f32 %v805, %v813
  %v816 = vmul.f32 %v814, %v814
  %v817 = vmul.f32 %v815, %v815
  %v818 = vsel %vm250, %v816, 0.0
  %819 = vadd.xlane.f32.xlu0 %v818
  %v820 = vpop.xlane.xlu0 %819
  %v821 = vsel %vm250, %v817, 0.0
  %822 = vadd.xlane.f32.xlu0 %v821
  %v823 = vpop.xlane.xlu0 %822
  %v824 = vmul.f32 %v820, %v263
  %v825 = vmul.f32 %v823, %v263
  %v826 = vadd.f32 %v824, 1e-05
  %v827 = vadd.f32 %v825, 1e-05
  %v828 = vrsqrt.pop %v826
  %v829 = vmul.f32 %v828, %v826
  %v830 = vmul.f32 %v829, %v828
  %v831 = vmul.f32 0.5, %v830
  %v832 = vsub.f32 1.5, %v831
  %v833 = vmul.f32 %v828, %v832
  %vm834 = vweird.f32 %v826
  %vm835 = vweird.f32 %v828
  %vm836 = vmor %vm834, %vm835
  %v837 = vsel %vm836, %v828, %v833
  %v838 = vrsqrt.pop %v827
  %v839 = vmul.f32 %v838, %v827
  %v840 = vmul.f32 %v839, %v838
  %v841 = vmul.f32 0.5, %v840
  %v842 = vsub.f32 1.5, %v841
  %v843 = vmul.f32 %v838, %v842
  %vm844 = vweird.f32 %v827
  %vm845 = vweird.f32 %v838
  %vm846 = vmor %vm844, %vm845
  %v847 = vsel %vm846, %v838, %v843
  %v848 = vmul.f32 %v814, %v837
  %v849 = vmul.f32 %v815, %v847
  %v850 = vperm.slane %v249, 2
  %v851 = vmul.f32 %v848, %v850
  %v852 = vmul.f32 %v849, %v850
  %v853 = vperm.slane %v249, 3
  %v854 = vadd.f32 %v851, %v853
  %v855 = vadd.f32 %v852, %v853
  %s856 = scalar_lea.vmem %s4, 192
  %v857 = vld [vmem:[%s856] sm:$0xff]
  %v858 = vld [vmem:[%s856 + $0x8] sm:$0xff]
  %v859 = vld [vmem:[%s856 + $0x10] sm:$0xff]
  %v860 = vld [vmem:[%s856 + $0x18] sm:$0xff]
  %v861 = vld [vmem:[%s856 + $0x20] sm:$0xff]
  %v862 = vld [vmem:[%s856 + $0x28] sm:$0xff]
  %v863 = vld [vmem:[%s856 + $0x30] sm:$0xff]
  %v864 = vld [vmem:[%s856 + $0x38] sm:$0xff]
  %v865 = vld [vmem:[%s856 + $0x40] sm:$0xff]
  %v866 = vld [vmem:[%s856 + $0x48] sm:$0xff]
  %v867 = vld [vmem:[%s856 + $0x50] sm:$0xff]
  %v868 = vld [vmem:[%s856 + $0x58] sm:$0xff]
  %v869 = vld [vmem:[%s856 + $0x60] sm:$0xff]
  %v870 = vld [vmem:[%s856 + $0x68] sm:$0xff]
  %v871 = vld [vmem:[%s856 + $0x70] sm:$0xff]
  %v872 = vld [vmem:[%s856 + $0x78] sm:$0xff]
  %v873 = vld [vmem:[%s856 + $0x80] sm:$0xff]
  %v874 = vld [vmem:[%s856 + $0x88] sm:$0xff]
  %v875 = vld [vmem:[%s856 + $0x90] sm:$0xff]
  %v876 = vld [vmem:[%s856 + $0x98] sm:$0xff]
  %v877 = vld [vmem:[%s856 + $0xa0] sm:$0xff]
  %v878 = vld [vmem:[%s856 + $0xa8] sm:$0xff]
  %v879 = vld [vmem:[%s856 + $0xb0] sm:$0xff]
  %v880 = vld [vmem:[%s856 + $0xb8] sm:$0xff]
  %s881 = scalar_lea.vmem %s5, 16
  %v882 = vld [vmem:[%s881] sm:$0xff]
  %v883 = vld [vmem:[%s881 + $0x8] sm:$0xff]
  %v884 = vsel %vm250, %v854, 0.0
  %885 = vadd.xlane.f32.xlu0 %v884
  %v886 = vpop.xlane.xlu0 %885
  %v887 = vsel %vm250, %v855, 0.0
  %888 = vadd.xlane.f32.xlu0 %v887
  %v889 = vpop.xlane.xlu0 %888
  %v890 = vmul.f32 %v886, %v263
  %v891 = vmul.f32 %v889, %v263
  %v892 = vsub.f32 %v854, %v890
  %v893 = vsub.f32 %v855, %v891
  %v894 = vmul.f32 %v892, %v892
  %v895 = vmul.f32 %v893, %v893
  %v896 = vsel %vm250, %v894, 0.0
  %897 = vadd.xlane.f32.xlu0 %v896
  %v898 = vpop.xlane.xlu0 %897
  %v899 = vsel %vm250, %v895, 0.0
  %900 = vadd.xlane.f32.xlu0 %v899
  %v901 = vpop.xlane.xlu0 %900
  %v902 = vmul.f32 %v898, %v263
  %v903 = vmul.f32 %v901, %v263
  %v904 = vadd.f32 %v902, 1e-08
  %v905 = vadd.f32 %v903, 1e-08
  %v906 = vrsqrt.pop %v904
  %v907 = vmul.f32 %v906, %v904
  %v908 = vmul.f32 %v907, %v906
  %v909 = vmul.f32 0.5, %v908
  %v910 = vsub.f32 1.5, %v909
  %v911 = vmul.f32 %v906, %v910
  %vm912 = vweird.f32 %v904
  %vm913 = vweird.f32 %v906
  %vm914 = vmor %vm912, %vm913
  %v915 = vsel %vm914, %v906, %v911
  %v916 = vrsqrt.pop %v905
  %v917 = vmul.f32 %v916, %v905
  %v918 = vmul.f32 %v917, %v916
  %v919 = vmul.f32 0.5, %v918
  %v920 = vsub.f32 1.5, %v919
  %v921 = vmul.f32 %v916, %v920
  %vm922 = vweird.f32 %v905
  %vm923 = vweird.f32 %v916
  %vm924 = vmor %vm922, %vm923
  %v925 = vsel %vm924, %v916, %v921
  %v926 = vmul.f32 %v892, %v915
  %v927 = vmul.f32 %v893, %v925
  %v928 = vperm.slane %v882, 0
  %v929 = vmul.f32 %v926, %v928
  %v930 = vmul.f32 %v927, %v928
  %v931 = vperm.slane %v882, 1
  %v932 = vadd.f32 %v929, %v931
  %v933 = vadd.f32 %v930, %v931
  %v934 = vperm.slane %v882, 2
  %v936 = vsel %vm250, %v932, 0
  %v939 = vsel %vm250, %v933, 0
  %941 = vmatpush.msra.mxu0 0.0
  %942 = vmatpush.msra.mxu0 0.0
  %943 = vmatpush.msra.mxu0 0.0
  %944 = vmatpush.msra.mxu0 0.0
  %945 = vmatpush.msra.mxu0 0.0
  %946 = vmatpush.msra.mxu0 0.0
  %947 = vmatpush.msra.mxu0 0.0
  %948 = vmatpush.msra.mxu0 0.0
  %949 = vmatpush.msra.mxu0 0.0
  %950 = vmatpush.msra.mxu0 0.0
  %951 = vmatpush.msra.mxu0 0.0
  %952 = vmatpush.msra.mxu0 0.0
  %953 = vmatpush.msra.mxu0 %v860
  %954 = vmatpush.msra.mxu0 %v859
  %955 = vmatpush.msra.mxu0 %v858
  %956 = vmatpush.msra.mxu0 %v857
  %957 = vmatmul.f32.gmra.mxu0 %v936
  %v958 = vpop.f32.mrf.mxu0
  %v959 = vadd.f32 %v934, %v958
  %960 = vmatmul.f32.gmra.mxu0 %v939
  %v961 = vpop.f32.mrf.mxu0
  %v962 = vadd.f32 %v934, %v961
  %963 = vdwg.mxu0
  %v964 = vperm.slane %v882, 3
  %v966 = vsel %vm250, %v854, 0
  %v969 = vsel %vm250, %v855, 0
  %971 = vmatpush.msra.mxu0 0.0
  %972 = vmatpush.msra.mxu0 0.0
  %973 = vmatpush.msra.mxu0 0.0
  %974 = vmatpush.msra.mxu0 0.0
  %975 = vmatpush.msra.mxu0 0.0
  %976 = vmatpush.msra.mxu0 0.0
  %977 = vmatpush.msra.mxu0 0.0
  %978 = vmatpush.msra.mxu0 0.0
  %979 = vmatpush.msra.mxu0 0.0
  %980 = vmatpush.msra.mxu0 0.0
  %981 = vmatpush.msra.mxu0 0.0
  %982 = vmatpush.msra.mxu0 0.0
  %983 = vmatpush.msra.mxu0 %v864
  %984 = vmatpush.msra.mxu0 %v863
  %985 = vmatpush.msra.mxu0 %v862
  %986 = vmatpush.msra.mxu0 %v861
  %987 = vmatmul.f32.gmra.mxu0 %v966
  %v988 = vpop.f32.mrf.mxu0
  %v989 = vadd.f32 %v964, %v988
  %990 = vmatmul.f32.gmra.mxu0 %v969
  %v991 = vpop.f32.mrf.mxu0
  %v992 = vadd.f32 %v964, %v991
  %993 = vdwg.mxu0
  %v994 = vperm.slane %v882, 4
  %995 = vmatpush.msra.mxu0 0.0
  %996 = vmatpush.msra.mxu0 0.0
  %997 = vmatpush.msra.mxu0 0.0
  %998 = vmatpush.msra.mxu0 0.0
  %999 = vmatpush.msra.mxu0 0.0
  %1000 = vmatpush.msra.mxu0 0.0
  %1001 = vmatpush.msra.mxu0 0.0
  %1002 = vmatpush.msra.mxu0 0.0
  %1003 = vmatpush.msra.mxu0 0.0
  %1004 = vmatpush.msra.mxu0 0.0
  %1005 = vmatpush.msra.mxu0 0.0
  %1006 = vmatpush.msra.mxu0 0.0
  %1007 = vmatpush.msra.mxu0 %v868
  %1008 = vmatpush.msra.mxu0 %v867
  %1009 = vmatpush.msra.mxu0 %v866
  %1010 = vmatpush.msra.mxu0 %v865
  %1011 = vmatmul.f32.gmra.mxu0 %v966
  %v1012 = vpop.f32.mrf.mxu0
  %v1013 = vadd.f32 %v994, %v1012
  %1014 = vmatmul.f32.gmra.mxu0 %v969
  %v1015 = vpop.f32.mrf.mxu0
  %v1016 = vadd.f32 %v994, %v1015
  %1017 = vdwg.mxu0
  %v1019 = vsel %vm392, %v959, 0
  %v1022 = vsel %vm392, %v962, 0
  %v1025 = vsel %vm392, %v989, 0
  %v1028 = vsel %vm392, %v992, 0
  %1030 = vmatpush.xpose.msra.mxu0 0.0
  %1031 = vmatpush.xpose.msra.mxu0 0.0
  %1032 = vmatpush.xpose.msra.mxu0 0.0
  %1033 = vmatpush.xpose.msra.mxu0 0.0
  %1034 = vmatpush.xpose.msra.mxu0 0.0
  %1035 = vmatpush.xpose.msra.mxu0 0.0
  %1036 = vmatpush.xpose.msra.mxu0 0.0
  %1037 = vmatpush.xpose.msra.mxu0 0.0
  %1038 = vmatpush.xpose.msra.mxu0 0.0
  %1039 = vmatpush.xpose.msra.mxu0 0.0
  %1040 = vmatpush.xpose.msra.mxu0 0.0
  %1041 = vmatpush.xpose.msra.mxu0 0.0
  %1042 = vmatpush.xpose.msra.mxu0 0.0
  %1043 = vmatpush.xpose.msra.mxu0 0.0
  %1044 = vmatpush.xpose.msra.mxu0 %v1028
  %1045 = vmatpush.xpose.msra.mxu0 %v1025
  %1046 = vmatmul.f32.gmra.mxu0 %v1019
  %v1047 = vpop.f32.mrf.mxu0
  %v1048 = vadd.f32 %v222, %v1047
  %1049 = vmatmul.f32.gmra.mxu0 %v1022
  %v1050 = vpop.f32.mrf.mxu0
  %v1051 = vadd.f32 %v223, %v1050
  %1052 = vdwg.mxu0
  %v1053 = vsel %vm392, %v1048, -inf
  %1054 = vmax.xlane.f32.xlu0 %v1053
  %v1055 = vpop.xlane.xlu0 %1054
  %v1056 = vsel %vm392, %v1051, -inf
  %1057 = vmax.xlane.f32.xlu0 %v1056
  %v1058 = vpop.xlane.xlu0 %1057
  %v1059 = vsub.f32 %v1048, %v1055
  %v1060 = vsub.f32 %v1051, %v1058
  %v1061 = vmul.f32 %v1059, 1.442695
  %v1062 = vpow.pop %v1061
  %v1063 = vmul.f32 %v1060, 1.442695
  %v1064 = vpow.pop %v1063
  %v1065 = vsel %vm392, %v1062, 0.0
  %1066 = vadd.xlane.f32.xlu0 %v1065
  %v1067 = vpop.xlane.xlu0 %1066
  %v1068 = vsel %vm392, %v1064, 0.0
  %1069 = vadd.xlane.f32.xlu0 %v1068
  %v1070 = vpop.xlane.xlu0 %1069
  %v1071 = vrcp.pop %v1067
  %v1072 = vmul.f32 %v1067, %v1071
  %v1073 = vsub.f32 1.0, %v1072
  %v1074 = vmul.f32 %v1071, %v1073
  %v1075 = vadd.f32 %v1071, %v1074
  %vm1076 = vweird.f32 %v1067
  %vm1077 = vweird.f32 %v1071
  %vm1078 = vmor %vm1076, %vm1077
  %v1079 = vsel %vm1078, %v1071, %v1075
  %v1080 = vand.u32 2147483647, %v1067
  %vm1081 = vcmp.eq.f32.partialorder %v1080, 8.507059e+37
  %v1082 = vand.u32 %v1067, 2147483648
  %v1083 = vor.u32 1.1754944e-38, %v1082
  %v1084 = vsel %vm1081, %v1083, %v1079
  %v1085 = vmul.f32 %v1062, %v1084
  %v1086 = vrcp.pop %v1070
  %v1087 = vmul.f32 %v1070, %v1086
  %v1088 = vsub.f32 1.0, %v1087
  %v1089 = vmul.f32 %v1086, %v1088
  %v1090 = vadd.f32 %v1086, %v1089
  %vm1091 = vweird.f32 %v1070
  %vm1092 = vweird.f32 %v1086
  %vm1093 = vmor %vm1091, %vm1092
  %v1094 = vsel %vm1093, %v1086, %v1090
  %v1095 = vand.u32 2147483647, %v1070
  %vm1096 = vcmp.eq.f32.partialorder %v1095, 8.507059e+37
  %v1097 = vand.u32 %v1070, 2147483648
  %v1098 = vor.u32 1.1754944e-38, %v1097
  %v1099 = vsel %vm1096, %v1098, %v1094
  %v1100 = vmul.f32 %v1064, %v1099
  %v1102 = vsel %vm392, %v1085, 0
  %v1105 = vsel %vm392, %v1100, 0
  %1107 = vmatpush.msra.mxu0 0.0
  %1108 = vmatpush.msra.mxu0 0.0
  %1109 = vmatpush.msra.mxu0 0.0
  %1110 = vmatpush.msra.mxu0 0.0
  %1111 = vmatpush.msra.mxu0 0.0
  %1112 = vmatpush.msra.mxu0 0.0
  %1113 = vmatpush.msra.mxu0 0.0
  %1114 = vmatpush.msra.mxu0 0.0
  %1115 = vmatpush.msra.mxu0 0.0
  %1116 = vmatpush.msra.mxu0 0.0
  %1117 = vmatpush.msra.mxu0 0.0
  %1118 = vmatpush.msra.mxu0 0.0
  %1119 = vmatpush.msra.mxu0 0.0
  %1120 = vmatpush.msra.mxu0 0.0
  %1121 = vmatpush.msra.mxu0 %v1016
  %1122 = vmatpush.msra.mxu0 %v1013
  %1123 = vmatmul.f32.gmra.mxu0 %v1102
  %v1124 = vpop.f32.mrf.mxu0
  %v1125 = vadd.f32 0.0, %v1124
  %1126 = vmatmul.f32.gmra.mxu0 %v1105
  %v1127 = vpop.f32.mrf.mxu0
  %v1128 = vadd.f32 0.0, %v1127
  %1129 = vdwg.mxu0
  %1130 = vrot.lane.b32.xlu0 %v959, 112
  %v1131 = vpop.permute.xlu0 %1130
  %1132 = vrot.lane.b32.xlu0 %v962, 112
  %v1133 = vpop.permute.xlu0 %1132
  %1134 = vrot.lane.b32.xlu0 %v989, 112
  %v1135 = vpop.permute.xlu0 %1134
  %1136 = vrot.lane.b32.xlu0 %v992, 112
  %v1137 = vpop.permute.xlu0 %1136
  %v1138 = vsel %vm392, %v1131, 0
  %v1140 = vsel %vm392, %v1133, 0
  %v1142 = vsel %vm392, %v1135, 0
  %v1144 = vsel %vm392, %v1137, 0
  %1146 = vmatpush.xpose.msra.mxu0 0.0
  %1147 = vmatpush.xpose.msra.mxu0 0.0
  %1148 = vmatpush.xpose.msra.mxu0 0.0
  %1149 = vmatpush.xpose.msra.mxu0 0.0
  %1150 = vmatpush.xpose.msra.mxu0 0.0
  %1151 = vmatpush.xpose.msra.mxu0 0.0
  %1152 = vmatpush.xpose.msra.mxu0 0.0
  %1153 = vmatpush.xpose.msra.mxu0 0.0
  %1154 = vmatpush.xpose.msra.mxu0 0.0
  %1155 = vmatpush.xpose.msra.mxu0 0.0
  %1156 = vmatpush.xpose.msra.mxu0 0.0
  %1157 = vmatpush.xpose.msra.mxu0 0.0
  %1158 = vmatpush.xpose.msra.mxu0 0.0
  %1159 = vmatpush.xpose.msra.mxu0 0.0
  %1160 = vmatpush.xpose.msra.mxu0 %v1144
  %1161 = vmatpush.xpose.msra.mxu0 %v1142
  %1162 = vmatmul.f32.gmra.mxu0 %v1138
  %v1163 = vpop.f32.mrf.mxu0
  %v1164 = vadd.f32 %v222, %v1163
  %1165 = vmatmul.f32.gmra.mxu0 %v1140
  %v1166 = vpop.f32.mrf.mxu0
  %v1167 = vadd.f32 %v223, %v1166
  %1168 = vdwg.mxu0
  %v1169 = vsel %vm392, %v1164, -inf
  %1170 = vmax.xlane.f32.xlu0 %v1169
  %v1171 = vpop.xlane.xlu0 %1170
  %v1172 = vsel %vm392, %v1167, -inf
  %1173 = vmax.xlane.f32.xlu0 %v1172
  %v1174 = vpop.xlane.xlu0 %1173
  %v1175 = vsub.f32 %v1164, %v1171
  %v1176 = vsub.f32 %v1167, %v1174
  %v1177 = vmul.f32 %v1175, 1.442695
  %v1178 = vpow.pop %v1177
  %v1179 = vmul.f32 %v1176, 1.442695
  %v1180 = vpow.pop %v1179
  %v1181 = vsel %vm392, %v1178, 0.0
  %1182 = vadd.xlane.f32.xlu0 %v1181
  %v1183 = vpop.xlane.xlu0 %1182
  %v1184 = vsel %vm392, %v1180, 0.0
  %1185 = vadd.xlane.f32.xlu0 %v1184
  %v1186 = vpop.xlane.xlu0 %1185
  %v1187 = vrcp.pop %v1183
  %v1188 = vmul.f32 %v1183, %v1187
  %v1189 = vsub.f32 1.0, %v1188
  %v1190 = vmul.f32 %v1187, %v1189
  %v1191 = vadd.f32 %v1187, %v1190
  %vm1192 = vweird.f32 %v1183
  %vm1193 = vweird.f32 %v1187
  %vm1194 = vmor %vm1192, %vm1193
  %v1195 = vsel %vm1194, %v1187, %v1191
  %v1196 = vand.u32 2147483647, %v1183
  %vm1197 = vcmp.eq.f32.partialorder %v1196, 8.507059e+37
  %v1198 = vand.u32 %v1183, 2147483648
  %v1199 = vor.u32 1.1754944e-38, %v1198
  %v1200 = vsel %vm1197, %v1199, %v1195
  %v1201 = vmul.f32 %v1178, %v1200
  %v1202 = vrcp.pop %v1186
  %v1203 = vmul.f32 %v1186, %v1202
  %v1204 = vsub.f32 1.0, %v1203
  %v1205 = vmul.f32 %v1202, %v1204
  %v1206 = vadd.f32 %v1202, %v1205
  %vm1207 = vweird.f32 %v1186
  %vm1208 = vweird.f32 %v1202
  %vm1209 = vmor %vm1207, %vm1208
  %v1210 = vsel %vm1209, %v1202, %v1206
  %v1211 = vand.u32 2147483647, %v1186
  %vm1212 = vcmp.eq.f32.partialorder %v1211, 8.507059e+37
  %v1213 = vand.u32 %v1186, 2147483648
  %v1214 = vor.u32 1.1754944e-38, %v1213
  %v1215 = vsel %vm1212, %v1214, %v1210
  %v1216 = vmul.f32 %v1180, %v1215
  %1219 = vrot.lane.b32.xlu0 %v1013, 112
  %v1220 = vpop.permute.xlu0 %1219
  %1221 = vrot.lane.b32.xlu0 %v1016, 112
  %v1222 = vpop.permute.xlu0 %1221
  %v1226 = vsel %vm392, %v1201, 0
  %v1229 = vsel %vm392, %v1216, 0
  %1231 = vmatpush.msra.mxu0 0.0
  %1232 = vmatpush.msra.mxu0 0.0
  %1233 = vmatpush.msra.mxu0 0.0
  %1234 = vmatpush.msra.mxu0 0.0
  %1235 = vmatpush.msra.mxu0 0.0
  %1236 = vmatpush.msra.mxu0 0.0
  %1237 = vmatpush.msra.mxu0 0.0
  %1238 = vmatpush.msra.mxu0 0.0
  %1239 = vmatpush.msra.mxu0 0.0
  %1240 = vmatpush.msra.mxu0 0.0
  %1241 = vmatpush.msra.mxu0 0.0
  %1242 = vmatpush.msra.mxu0 0.0
  %1243 = vmatpush.msra.mxu0 0.0
  %1244 = vmatpush.msra.mxu0 0.0
  %1245 = vmatpush.msra.mxu0 %v1222
  %1246 = vmatpush.msra.mxu0 %v1220
  %1247 = vmatmul.f32.gmra.mxu0 %v1226
  %v1248 = vpop.f32.mrf.mxu0
  %v1249 = vadd.f32 0.0, %v1248
  %1250 = vmatmul.f32.gmra.mxu0 %v1229
  %v1251 = vpop.f32.mrf.mxu0
  %v1252 = vadd.f32 0.0, %v1251
  %1253 = vdwg.mxu0
  %v1255 = vsel %vm392, %v1249, 0
  %v1258 = vsel %vm392, %v1252, 0
  %1260 = vmatpush.msra.mxu0 0.0
  %1261 = vmatpush.msra.mxu0 0.0
  %1262 = vmatpush.msra.mxu0 0.0
  %1263 = vmatpush.msra.mxu0 0.0
  %1264 = vmatpush.msra.mxu0 0.0
  %1265 = vmatpush.msra.mxu0 0.0
  %1266 = vmatpush.msra.mxu0 0.0
  %1267 = vmatpush.msra.mxu0 0.0
  %1268 = vmatpush.msra.mxu0 0.0
  %1269 = vmatpush.msra.mxu0 0.0
  %1270 = vmatpush.msra.mxu0 0.0
  %1271 = vmatpush.msra.mxu0 0.0
  %1272 = vmatpush.msra.mxu0 0.0
  %1273 = vmatpush.msra.mxu0 0.0
  %1274 = vmatpush.msra.mxu0 %v872
  %1275 = vmatpush.msra.mxu0 %v871
  %1276 = vmatmul.f32.gmra.mxu0 %v1255
  %v1277 = vpop.f32.mrf.mxu0
  %v1278 = vadd.f32 0.0, %v1277
  %1279 = vmatmul.f32.gmra.mxu0 %v1258
  %v1280 = vpop.f32.mrf.mxu0
  %v1281 = vadd.f32 0.0, %v1280
  %1282 = vdwg.mxu0
  %v1284 = vsel %vm392, %v1125, 0
  %v1287 = vsel %vm392, %v1128, 0
  %1289 = vmatpush.msra.mxu0 0.0
  %1290 = vmatpush.msra.mxu0 0.0
  %1291 = vmatpush.msra.mxu0 0.0
  %1292 = vmatpush.msra.mxu0 0.0
  %1293 = vmatpush.msra.mxu0 0.0
  %1294 = vmatpush.msra.mxu0 0.0
  %1295 = vmatpush.msra.mxu0 0.0
  %1296 = vmatpush.msra.mxu0 0.0
  %1297 = vmatpush.msra.mxu0 0.0
  %1298 = vmatpush.msra.mxu0 0.0
  %1299 = vmatpush.msra.mxu0 0.0
  %1300 = vmatpush.msra.mxu0 0.0
  %1301 = vmatpush.msra.mxu0 0.0
  %1302 = vmatpush.msra.mxu0 0.0
  %1303 = vmatpush.msra.mxu0 %v870
  %1304 = vmatpush.msra.mxu0 %v869
  %1305 = vmatmul.f32.gmra.mxu0 %v1284
  %v1306 = vpop.f32.mrf.mxu0
  %v1307 = vadd.f32 %v1278, %v1306
  %1308 = vmatmul.f32.gmra.mxu0 %v1287
  %v1309 = vpop.f32.mrf.mxu0
  %v1310 = vadd.f32 %v1281, %v1309
  %1311 = vdwg.mxu0
  %v1312 = vadd.f32 %v932, %v1307
  %v1313 = vadd.f32 %v933, %v1310
  %v1314 = vperm.slane %v882, 5
  %v1315 = vadd.f32 %v1312, %v1314
  %v1316 = vadd.f32 %v1313, %v1314
  %v1317 = vsel %vm250, %v1315, 0.0
  %1318 = vadd.xlane.f32.xlu0 %v1317
  %v1319 = vpop.xlane.xlu0 %1318
  %v1320 = vsel %vm250, %v1316, 0.0
  %1321 = vadd.xlane.f32.xlu0 %v1320
  %v1322 = vpop.xlane.xlu0 %1321
  %v1323 = vmul.f32 %v1319, %v263
  %v1324 = vmul.f32 %v1322, %v263
  %v1325 = vsub.f32 %v1315, %v1323
  %v1326 = vsub.f32 %v1316, %v1324
  %v1327 = vmul.f32 %v1325, %v1325
  %v1328 = vmul.f32 %v1326, %v1326
  %v1329 = vsel %vm250, %v1327, 0.0
  %1330 = vadd.xlane.f32.xlu0 %v1329
  %v1331 = vpop.xlane.xlu0 %1330
  %v1332 = vsel %vm250, %v1328, 0.0
  %1333 = vadd.xlane.f32.xlu0 %v1332
  %v1334 = vpop.xlane.xlu0 %1333
  %v1335 = vmul.f32 %v1331, %v263
  %v1336 = vmul.f32 %v1334, %v263
  %v1337 = vadd.f32 %v1335, 1e-08
  %v1338 = vadd.f32 %v1336, 1e-08
  %v1339 = vrsqrt.pop %v1337
  %v1340 = vmul.f32 %v1339, %v1337
  %v1341 = vmul.f32 %v1340, %v1339
  %v1342 = vmul.f32 0.5, %v1341
  %v1343 = vsub.f32 1.5, %v1342
  %v1344 = vmul.f32 %v1339, %v1343
  %vm1345 = vweird.f32 %v1337
  %vm1346 = vweird.f32 %v1339
  %vm1347 = vmor %vm1345, %vm1346
  %v1348 = vsel %vm1347, %v1339, %v1344
  %v1349 = vrsqrt.pop %v1338
  %v1350 = vmul.f32 %v1349, %v1338
  %v1351 = vmul.f32 %v1350, %v1349
  %v1352 = vmul.f32 0.5, %v1351
  %v1353 = vsub.f32 1.5, %v1352
  %v1354 = vmul.f32 %v1349, %v1353
  %vm1355 = vweird.f32 %v1338
  %vm1356 = vweird.f32 %v1349
  %vm1357 = vmor %vm1355, %vm1356
  %v1358 = vsel %vm1357, %v1349, %v1354
  %v1359 = vmul.f32 %v1325, %v1348
  %v1360 = vmul.f32 %v1326, %v1358
  %v1361 = vperm.slane %v882, 6
  %v1362 = vmul.f32 %v1359, %v1361
  %v1363 = vmul.f32 %v1360, %v1361
  %v1364 = vperm.slane %v882, 7
  %v1365 = vadd.f32 %v1362, %v1364
  %v1366 = vadd.f32 %v1363, %v1364
  %v1367 = vperm.slane %v883, 0
  %v1369 = vsel %vm250, %v1365, 0
  %v1372 = vsel %vm250, %v1366, 0
  %1374 = vmatpush.msra.mxu0 0.0
  %1375 = vmatpush.msra.mxu0 0.0
  %1376 = vmatpush.msra.mxu0 0.0
  %1377 = vmatpush.msra.mxu0 0.0
  %1378 = vmatpush.msra.mxu0 0.0
  %1379 = vmatpush.msra.mxu0 0.0
  %1380 = vmatpush.msra.mxu0 0.0
  %1381 = vmatpush.msra.mxu0 0.0
  %1382 = vmatpush.msra.mxu0 0.0
  %1383 = vmatpush.msra.mxu0 0.0
  %1384 = vmatpush.msra.mxu0 0.0
  %1385 = vmatpush.msra.mxu0 0.0
  %1386 = vmatpush.msra.mxu0 %v876
  %1387 = vmatpush.msra.mxu0 %v875
  %1388 = vmatpush.msra.mxu0 %v874
  %1389 = vmatpush.msra.mxu0 %v873
  %1390 = vmatmul.f32.gmra.mxu0 %v1369
  %v1391 = vpop.f32.mrf.mxu0
  %v1392 = vadd.f32 %v1367, %v1391
  %1393 = vmatmul.f32.gmra.mxu0 %v1372
  %v1394 = vpop.f32.mrf.mxu0
  %v1395 = vadd.f32 %v1367, %v1394
  %1396 = vdwg.mxu0
  %v1397 = vmax.f32 %v1392, 0.0
  %v1398 = vmax.f32 %v1395, 0.0
  %v1399 = vperm.slane %v883, 1
  %v1401 = vsel %vm250, %v1397, 0
  %v1404 = vsel %vm250, %v1398, 0
  %1406 = vmatpush.msra.mxu0 0.0
  %1407 = vmatpush.msra.mxu0 0.0
  %1408 = vmatpush.msra.mxu0 0.0
  %1409 = vmatpush.msra.mxu0 0.0
  %1410 = vmatpush.msra.mxu0 0.0
  %1411 = vmatpush.msra.mxu0 0.0
  %1412 = vmatpush.msra.mxu0 0.0
  %1413 = vmatpush.msra.mxu0 0.0
  %1414 = vmatpush.msra.mxu0 0.0
  %1415 = vmatpush.msra.mxu0 0.0
  %1416 = vmatpush.msra.mxu0 0.0
  %1417 = vmatpush.msra.mxu0 0.0
  %1418 = vmatpush.msra.mxu0 %v880
  %1419 = vmatpush.msra.mxu0 %v879
  %1420 = vmatpush.msra.mxu0 %v878
  %1421 = vmatpush.msra.mxu0 %v877
  %1422 = vmatmul.f32.gmra.mxu0 %v1401
  %v1423 = vpop.f32.mrf.mxu0
  %v1424 = vadd.f32 %v1399, %v1423
  %1425 = vmatmul.f32.gmra.mxu0 %v1404
  %v1426 = vpop.f32.mrf.mxu0
  %v1427 = vadd.f32 %v1399, %v1426
  %1428 = vdwg.mxu0
  %v1429 = vadd.f32 %v1365, %v1424
  %v1430 = vadd.f32 %v1366, %v1427
  %v1431 = vsel %vm250, %v1429, 0.0
  %1432 = vadd.xlane.f32.xlu0 %v1431
  %v1433 = vpop.xlane.xlu0 %1432
  %v1434 = vsel %vm250, %v1430, 0.0
  %1435 = vadd.xlane.f32.xlu0 %v1434
  %v1436 = vpop.xlane.xlu0 %1435
  %v1437 = vmul.f32 %v1433, %v263
  %v1438 = vmul.f32 %v1436, %v263
  %v1439 = vsub.f32 %v1429, %v1437
  %v1440 = vsub.f32 %v1430, %v1438
  %v1441 = vmul.f32 %v1439, %v1439
  %v1442 = vmul.f32 %v1440, %v1440
  %v1443 = vsel %vm250, %v1441, 0.0
  %1444 = vadd.xlane.f32.xlu0 %v1443
  %v1445 = vpop.xlane.xlu0 %1444
  %v1446 = vsel %vm250, %v1442, 0.0
  %1447 = vadd.xlane.f32.xlu0 %v1446
  %v1448 = vpop.xlane.xlu0 %1447
  %v1449 = vmul.f32 %v1445, %v263
  %v1450 = vmul.f32 %v1448, %v263
  %v1451 = vadd.f32 %v1449, 1e-05
  %v1452 = vadd.f32 %v1450, 1e-05
  %v1453 = vrsqrt.pop %v1451
  %v1454 = vmul.f32 %v1453, %v1451
  %v1455 = vmul.f32 %v1454, %v1453
  %v1456 = vmul.f32 0.5, %v1455
  %v1457 = vsub.f32 1.5, %v1456
  %v1458 = vmul.f32 %v1453, %v1457
  %vm1459 = vweird.f32 %v1451
  %vm1460 = vweird.f32 %v1453
  %vm1461 = vmor %vm1459, %vm1460
  %v1462 = vsel %vm1461, %v1453, %v1458
  %v1463 = vrsqrt.pop %v1452
  %v1464 = vmul.f32 %v1463, %v1452
  %v1465 = vmul.f32 %v1464, %v1463
  %v1466 = vmul.f32 0.5, %v1465
  %v1467 = vsub.f32 1.5, %v1466
  %v1468 = vmul.f32 %v1463, %v1467
  %vm1469 = vweird.f32 %v1452
  %vm1470 = vweird.f32 %v1463
  %vm1471 = vmor %vm1469, %vm1470
  %v1472 = vsel %vm1471, %v1463, %v1468
  %v1473 = vmul.f32 %v1439, %v1462
  %v1474 = vmul.f32 %v1440, %v1472
  %v1475 = vperm.slane %v883, 2
  %v1476 = vmul.f32 %v1473, %v1475
  %v1477 = vmul.f32 %v1474, %v1475
  %v1478 = vperm.slane %v883, 3
  %v1479 = vadd.f32 %v1476, %v1478
  %v1480 = vadd.f32 %v1477, %v1478
  %v1482 = vrot.slane %v1479, 7
  %v1485 = vrot.slane %v1480, 6
  %vm1487 = vcmask 1040384
  %v1488 = vsel %vm1487, %v1482, %v1485
  %vm1489 = vcmask 254976
  %v1490 = vsel %vm1489, %v1488, 0.0
  %1491 = vadd.xlane.f32.xlu0 %v1490
  %v1492 = vpop.xlane.xlu0 %1491
  %v1493 = vmul.f32 %v1492, %v263
  %v1494 = vsub.f32 %v1488, %v1493
  %v1495 = vmul.f32 %v1494, %v1494
  %v1496 = vsel %vm1489, %v1495, 0.0
  %1497 = vadd.xlane.f32.xlu0 %v1496
  %v1498 = vpop.xlane.xlu0 %1497
  %v1499 = vmul.f32 %v1498, %v263
  %v1500 = vadd.f32 %v1499, 1e-08
  %v1501 = vrsqrt.pop %v1500
  %v1502 = vmul.f32 %v1501, %v1500
  %v1503 = vmul.f32 %v1502, %v1501
  %v1504 = vmul.f32 0.5, %v1503
  %v1505 = vsub.f32 1.5, %v1504
  %v1506 = vmul.f32 %v1501, %v1505
  %vm1507 = vweird.f32 %v1500
  %vm1508 = vweird.f32 %v1501
  %vm1509 = vmor %vm1507, %vm1508
  %v1510 = vsel %vm1509, %v1501, %v1506
  %v1511 = vmul.f32 %v1494, %v1510
  %v1513 = vsel %vm250, %v1511, 0
  %1515 = vmatpush.msra.mxu0 0.0
  %1516 = vmatpush.msra.mxu0 0.0
  %1517 = vmatpush.msra.mxu0 0.0
  %1518 = vmatpush.msra.mxu0 0.0
  %1519 = vmatpush.msra.mxu0 0.0
  %1520 = vmatpush.msra.mxu0 0.0
  %1521 = vmatpush.msra.mxu0 0.0
  %1522 = vmatpush.msra.mxu0 0.0
  %1523 = vmatpush.msra.mxu0 0.0
  %1524 = vmatpush.msra.mxu0 0.0
  %1525 = vmatpush.msra.mxu0 0.0
  %1526 = vmatpush.msra.mxu0 0.0
  %1527 = vmatpush.msra.mxu0 %v38
  %1528 = vmatpush.msra.mxu0 %v37
  %1529 = vmatpush.msra.mxu0 %v36
  %1530 = vmatpush.msra.mxu0 %v35
  %1531 = vmatmul.f32.gmra.mxu0 %v1513
  %v1532 = vpop.f32.mrf.mxu0
  %v1533 = vadd.f32 %v168, %v1532
  %1534 = vdwg.mxu0
  %v1535 = vmul.f32 %v1533, %v194
  %v1536 = vsel %vm1489, %v1535, 0.0
  %1537 = vadd.xlane.f32.xlu0 %v1536
  %v1538 = vpop.xlane.xlu0 %1537
  %vm1539 = vcmask 1024
  %1540 = vst.msk [vmem:[%s6] sm:$0x3] %vm1539, %v1538
  // Predicated region
  $region26: #{sasrec_forward.1} parent=0 // pred_check
    _
  $region27: #{sasrec_forward.1} parent=0 // pred_check_branch
    %1542 = sbr.rel (0) target = $region29
  $region28: #{sasrec_forward.1} parent=0 // pred_region
    _
  $region29: #{sasrec_forward.1} parent=0 // pred_fallthru
    _
  // Predicated region
  $region30: #{sasrec_forward.1} parent=0 // pred_check
    _
  $region31: #{sasrec_forward.1} parent=0 // pred_check_branch
    %1544 = sbr.rel (0) target = $region33
  $region32: #{sasrec_forward.1} parent=0 // pred_region
    _
  $region33: #{sasrec_forward.1} parent=0 // pred_fallthru
    _

</llo_original>
